<compile_context>
chip_gen: v7x
topology: tpu7x:2x2x1
jax: 0.10.0
libtpu: 0.0.40
codegen_flags: <defaults>
</compile_context>

<pallas_src>
import functools

import numpy as np
import jax
import jax.numpy as jnp
from jax.experimental import pallas as pl
from jax.experimental.pallas import tpu as pltpu

GAMMA_AGG = 0.015        # Conj2AtomConv.aggregate gamma
EPS_AGG = 1e-4           # Conj2AtomConv.eps
GAMMA_OR = 0.01          # soft_logic._or gamma
_INV_AGG = 1.0 / GAMMA_AGG
_INV_OR = 1.0 / GAMMA_OR

_SUB = 8                 # sublane multiple
_LANE = 128              # lane multiple


def _rup(x, m):
  return ((x + m - 1) // m) * m


# --------------------------------------------------------------------------- #
# Pallas kernel                                                                #
# --------------------------------------------------------------------------- #
def _mp_kernel(T, n_atom, n_conj, batch,
               xa_ref, xc_ref, ga_src_ref, ga_tgt_ref,
               gc_src_ref, gc_tgt_ref, ew_ref, out_ref):
  """T steps of bi-directional message passing.

  xa_ref:     [NA, BP]  atom-node features, batch on the lane axis
  xc_ref:     [NC, BP]  conj-node features
  ga_src_ref: [EA, NA]  atom2conj source gather   (one-hot rows)
  ga_tgt_ref: [NC, EA]  atom2conj target scatter  (one-hot columns)
  gc_src_ref: [EC, NC]  conj2atom source gather
  gc_tgt_ref: [NA, EC]  conj2atom target scatter
  ew_ref:     [EC, 1]   per conj2atom-edge clause weight
  out_ref:    [NA, BP]  final x_atom_new
  """
  dot = lambda a, b: jnp.dot(a, b, preferred_element_type=jnp.float32)

  xa = xa_ref[...]
  xc = xc_ref[...]
  ga_src = ga_src_ref[...]
  ga_tgt = ga_tgt_ref[...]
  gc_src = gc_src_ref[...]
  gc_tgt = gc_tgt_ref[...]
  ew = ew_ref[...]

  na_pad, bp = xa.shape
  nc_pad = xc.shape[0]

  # Validity masks (hoisted out of the T loop): padded rows / lanes must never
  # influence the module's batch-global ">1" renormalization maxes.
  lane_ok = jax.lax.broadcasted_iota(jnp.int32, (1, bp), 1) < batch
  mask_a = jnp.logical_and(
      jax.lax.broadcasted_iota(jnp.int32, (na_pad, 1), 0) < n_atom, lane_ok)
  mask_c = jnp.logical_and(
      jax.lax.broadcasted_iota(jnp.int32, (nc_pad, 1), 0) < n_conj, lane_ok)

  def renorm_scale(values, mask):
    # 1/max(values) if max > 1 else 1, as a (1,1) scalar: a reciprocal-multiply
    # instead of a full-width vector divide.  (approx=True would additionally
    # push the reciprocal onto the EUP at ~1e-3-level accuracy; kept exact so
    # the self-test stays tight.)
    vmax = jnp.max(jnp.where(mask, values, 0.0), keepdims=True)
    return jnp.where(vmax > 1.0, pl.reciprocal(vmax, approx=False), 1.0)

  def softor2(a, b, mask):
    # soft_logic._or(stack([a, b])): gamma * logsumexp(. / gamma), renormalized
    # by its (batch-global) max when that max exceeds 1.
    m = jnp.maximum(a, b)
    r = m + GAMMA_OR * jnp.log(jnp.exp((a - m) * _INV_OR)
                               + jnp.exp((b - m) * _INV_OR))
    return r * renorm_scale(r, mask)

  for _ in range(T):
    # ---- Atom2ConjConv: message = x_j ; aggregate = scatter_mul ------------
    x_j = dot(ga_src, xa)                                            # [EA, BP]
    prod = jnp.exp(dot(ga_tgt, jnp.log(jnp.maximum(x_j, 1e-20))))    # [NC, BP]
    xc = softor2(xc, prod, mask_c)                                   # update()

    # ---- Conj2AtomConv: message = w * x_j ; gamma-logsumexp aggregate ------
    x_j = dot(gc_src, xc)                                            # [EC, BP]
    msg = ew * x_j                                                   # [EC, BP]
    # Max-shifted logsumexp: algebraically identical to the module's
    # gamma*log(scatter_add(exp(msg/gamma)) + eps), but overflow-safe.
    shift = jnp.maximum(jnp.max(msg, keepdims=True), 0.0)            # (1, 1)
    ssum = dot(gc_tgt, jnp.exp((msg - shift) * _INV_AGG))            # [NA, BP]
    lse = shift + GAMMA_AGG * jnp.log(
        ssum + EPS_AGG * jnp.exp(-shift * _INV_AGG))
    lse = lse * renorm_scale(lse, mask_a)
    xa = softor2(xa, lse, mask_a)                                    # update()

  out_ref[...] = xa


# --------------------------------------------------------------------------- #
# Wrapper                                                                      #
# --------------------------------------------------------------------------- #
def message_passing_forward(x_nodes, a2c_src, a2c_tgt, c2a_src, c2a_tgt,
                            edge_clause_index, clause_weights,
                            n_atom, n_conj, T, batch_size):
  """Forward pass of MessagePassingModule.

  x_nodes: [batch_size * (n_atom + n_conj), 1]; per graph the node ordering is
  [atoms..., conjs...] (the module's `_cat_x_atom_x_conj` layout).  Edge lists
  are per-graph LOCAL indices (atom-local / conj-local endpoints); the same
  topology is shared by every graph in the batch, exactly as the PyTorch
  module's batching replicates it.  Returns x_atom_new: [batch_size, n_atom].
  """
  n_per = n_atom + n_conj
  ea, ec = len(a2c_src), len(c2a_src)
  na_pad, nc_pad = _rup(n_atom, _SUB), _rup(n_conj, _SUB)
  ea_pad, ec_pad = _rup(ea, _SUB), _rup(ec, _SUB)
  bp = _rup(batch_size, _LANE)

  # Per-graph structural one-hot matrices (built once, shared by the batch).
  ga_src_m = np.zeros((ea_pad, na_pad), np.float32)
  ga_src_m[np.arange(ea), np.asarray(a2c_src)] = 1.0
  ga_tgt_m = np.zeros((nc_pad, ea_pad), np.float32)
  ga_tgt_m[np.asarray(a2c_tgt), np.arange(ea)] = 1.0
  gc_src_m = np.zeros((ec_pad, nc_pad), np.float32)
  gc_src_m[np.arange(ec), np.asarray(c2a_src)] = 1.0
  gc_tgt_m = np.zeros((na_pad, ec_pad), np.float32)
  gc_tgt_m[np.asarray(c2a_tgt), np.arange(ec)] = 1.0

  # edge_weight = gather(clause_weights, conj2atom_edge_clause_index)
  ew_e = jnp.take(clause_weights.astype(jnp.float32),
                  jnp.asarray(edge_clause_index, jnp.int32))
  ew = jnp.zeros((ec_pad, 1), jnp.float32).at[:ec, 0].set(ew_e)

  # Batched state, batch on the 128-padded lane axis.
  x = x_nodes.reshape(batch_size, n_per).astype(jnp.float32)
  xa0 = jnp.zeros((na_pad, bp), jnp.float32).at[:n_atom, :batch_size].set(
      x[:, :n_atom].T)
  xc0 = jnp.zeros((nc_pad, bp), jnp.float32).at[:n_conj, :batch_size].set(
      x[:, n_atom:].T)

  vmem = lambda: pl.BlockSpec(memory_space=pltpu.MemorySpace.VMEM)
  out = pl.pallas_call(
      functools.partial(_mp_kernel, T, n_atom, n_conj, batch_size),
      out_shape=jax.ShapeDtypeStruct((na_pad, bp), jnp.float32),
      in_specs=[vmem() for _ in range(7)],
      out_specs=vmem(),
      compiler_params=pltpu.CompilerParams(vmem_limit_bytes=32 * 1024 * 1024),
  )(xa0, xc0, jnp.asarray(ga_src_m), jnp.asarray(ga_tgt_m),
    jnp.asarray(gc_src_m), jnp.asarray(gc_tgt_m), ew)

  # x_atom_new.view(batch_size, -1)
  return out[:n_atom, :batch_size].T


# --------------------------------------------------------------------------- #
# Pure-JAX reference: faithful transcription of the PyTorch module on the     #
# full batched graph (global indices, real scatters, whole-tensor maxes).     #
# --------------------------------------------------------------------------- #
def _reference_forward(x_nodes, a2c_src, a2c_tgt, c2a_src, c2a_tgt,
                       edge_clause_index, clause_weights,
                       n_atom, n_conj, T, batch_size):
  n_per = n_atom + n_conj
  n_nodes = batch_size * n_per
  off = np.arange(batch_size)[:, None] * n_per
  atom_idx = jnp.asarray((off + np.arange(n_atom)[None, :]).reshape(-1))
  conj_idx = jnp.asarray((off + n_atom + np.arange(n_conj)[None, :]).reshape(-1))
  a2c_s = jnp.asarray((off + np.asarray(a2c_src)[None, :]).reshape(-1))
  a2c_t = jnp.asarray((off + n_atom + np.asarray(a2c_tgt)[None, :]).reshape(-1))
  c2a_s = jnp.asarray((off + n_atom + np.asarray(c2a_src)[None, :]).reshape(-1))
  c2a_t = jnp.asarray((off + np.asarray(c2a_tgt)[None, :]).reshape(-1))
  ew = jnp.take(clause_weights.astype(jnp.float32),
                jnp.asarray(np.tile(np.asarray(edge_clause_index), batch_size)))

  def softor(stacked):
    r = GAMMA_OR * jax.scipy.special.logsumexp(stacked * _INV_OR, axis=0)
    rmax = jnp.max(r)
    return jnp.where(rmax > 1.0, r / rmax, r)

  x = x_nodes.reshape(-1).astype(jnp.float32)
  x_atom_new = x[atom_idx]
  for _ in range(T):
    # Atom2ConjConv: scatter_mul of x[src] into targets (identity 1).
    prod = jnp.ones((n_nodes,), jnp.float32).at[a2c_t].multiply(x[a2c_s])
    x_conj_new = softor(jnp.stack([x[conj_idx], prod[conj_idx]]))
    x = (jnp.zeros((n_nodes,), jnp.float32)
         .at[atom_idx].set(x[atom_idx]).at[conj_idx].set(x_conj_new))
    # Conj2AtomConv: gamma*log(scatter_add(exp(w*x_j/gamma)) + eps), >1 renorm.
    msg = ew * x[c2a_s]
    agg = GAMMA_AGG * jnp.log(
        jnp.zeros((n_nodes,), jnp.float32).at[c2a_t].add(jnp.exp(msg * _INV_AGG))
        + EPS_AGG)
    aggmax = jnp.max(agg)
    agg = jnp.where(aggmax > 1.0, agg / aggmax, agg)
    x_atom_new = softor(jnp.stack([x[atom_idx], agg[atom_idx]]))
    x = (jnp.zeros((n_nodes,), jnp.float32)
         .at[atom_idx].set(x_atom_new).at[conj_idx].set(x_conj_new))
  return x_atom_new.reshape(batch_size, n_atom)


if __name__ == "__main__":
  batch_size = 2
  T = 3
  n_clauses = 3
  n_atom, n_conj = 6, 4

  # Per-graph reasoning-graph topology (local indices), shared by every graph
  # in the batch -- what the PyTorch module's batched edge_index encodes.
  a2c_src = [0, 1, 1, 2, 2, 3, 4, 5]      # atom -> conj : source atoms
  a2c_tgt = [0, 0, 1, 1, 2, 2, 3, 3]      #                target conjs
  c2a_src = [0, 1, 2, 3]                  # conj -> atom : source conjs
  c2a_tgt = [3, 4, 5, 0]                  #                target atoms (heads)
  edge_clause_index = [0, 1, 2, 0]        # clause producing each conj2atom edge

  key = jax.random.PRNGKey(0)
  k_x, k_w = jax.random.split(key)
  n_nodes = batch_size * (n_atom + n_conj)
  # Node features (valuations), shape [n_nodes, 1] as in data.x.
  x_nodes = jax.random.uniform(k_x, (n_nodes, 1), jnp.float32,
                               minval=0.05, maxval=0.95)
  # Clause weights in (0.75, 1.25) so the >1 renormalization branches are
  # actually exercised at run time (still overflow-safe: msg/gamma <= ~84).
  clause_weights = (jax.nn.sigmoid(jax.random.normal(k_w, (n_clauses,),
                                                     jnp.float32)) * 0.5 + 0.75)

  out = message_passing_forward(x_nodes, a2c_src, a2c_tgt, c2a_src, c2a_tgt,
                                edge_clause_index, clause_weights,
                                n_atom, n_conj, T, batch_size)
  out = jax.block_until_ready(out)

  ref = _reference_forward(x_nodes, a2c_src, a2c_tgt, c2a_src, c2a_tgt,
                           edge_clause_index, clause_weights,
                           n_atom, n_conj, T, batch_size)

  assert out.shape == (batch_size, n_atom), out.shape
  np.testing.assert_allclose(np.asarray(out), np.asarray(ref),
                             rtol=1e-4, atol=1e-4)
  print("KERNEL_OK")
</pallas_src>

<mosaic_0001>
module attributes {stable_mosaic.version = 11 : i64} {
  func.func @_mp_kernel(%arg0: memref<8x128xf32, #tpu.memory_space<vmem>>, %arg1: memref<8x128xf32, #tpu.memory_space<vmem>>, %arg2: memref<8x8xf32, #tpu.memory_space<vmem>>, %arg3: memref<8x8xf32, #tpu.memory_space<vmem>>, %arg4: memref<8x8xf32, #tpu.memory_space<vmem>>, %arg5: memref<8x8xf32, #tpu.memory_space<vmem>>, %arg6: memref<8x1xf32, #tpu.memory_space<vmem>>, %arg7: memref<8x128xf32, #tpu.memory_space<vmem>>) attributes {dimension_semantics = [], scalar_prefetch = 0 : i64, scratch_operands = 0 : i64, tpu.core_type = #tpu.core_type<tc>} {
    %c0 = arith.constant 0 : index
    %c0_0 = arith.constant 0 : index
    %0 = vector.load %arg0[%c0, %c0_0] : memref<8x128xf32, #tpu.memory_space<vmem>>, vector<8x128xf32>
    %c0_1 = arith.constant 0 : index
    %c0_2 = arith.constant 0 : index
    %1 = vector.load %arg1[%c0_1, %c0_2] : memref<8x128xf32, #tpu.memory_space<vmem>>, vector<8x128xf32>
    %c0_3 = arith.constant 0 : index
    %c0_4 = arith.constant 0 : index
    %2 = vector.load %arg2[%c0_3, %c0_4] : memref<8x8xf32, #tpu.memory_space<vmem>>, vector<8x8xf32>
    %c0_5 = arith.constant 0 : index
    %c0_6 = arith.constant 0 : index
    %3 = vector.load %arg3[%c0_5, %c0_6] : memref<8x8xf32, #tpu.memory_space<vmem>>, vector<8x8xf32>
    %c0_7 = arith.constant 0 : index
    %c0_8 = arith.constant 0 : index
    %4 = vector.load %arg4[%c0_7, %c0_8] : memref<8x8xf32, #tpu.memory_space<vmem>>, vector<8x8xf32>
    %c0_9 = arith.constant 0 : index
    %c0_10 = arith.constant 0 : index
    %5 = vector.load %arg5[%c0_9, %c0_10] : memref<8x8xf32, #tpu.memory_space<vmem>>, vector<8x8xf32>
    %c0_11 = arith.constant 0 : index
    %c0_12 = arith.constant 0 : index
    %6 = vector.load %arg6[%c0_11, %c0_12] : memref<8x1xf32, #tpu.memory_space<vmem>>, vector<8x1xf32>
    %7 = tpu.iota {dimensions = array<i32: 1>} : vector<1x128xi32>
    %c2_i32 = arith.constant 2 : i32
    %8 = vector.broadcast %c2_i32 : i32 to vector<1x128xi32>
    %9 = arith.cmpi slt, %7, %8 : vector<1x128xi32>
    %10 = tpu.iota {dimensions = array<i32: 0>} : vector<8x1xi32>
    %c6_i32 = arith.constant 6 : i32
    %11 = vector.broadcast %c6_i32 : i32 to vector<8x1xi32>
    %12 = arith.cmpi slt, %10, %11 : vector<8x1xi32>
    %13 = vector.broadcast %12 : vector<8x1xi1> to vector<8x128xi1>
    %14 = vector.broadcast %9 : vector<1x128xi1> to vector<8x128xi1>
    %15 = arith.andi %13, %14 : vector<8x128xi1>
    %16 = tpu.iota {dimensions = array<i32: 0>} : vector<8x1xi32>
    %c4_i32 = arith.constant 4 : i32
    %17 = vector.broadcast %c4_i32 : i32 to vector<8x1xi32>
    %18 = arith.cmpi slt, %16, %17 : vector<8x1xi32>
    %19 = vector.broadcast %18 : vector<8x1xi1> to vector<8x128xi1>
    %20 = vector.broadcast %9 : vector<1x128xi1> to vector<8x128xi1>
    %21 = arith.andi %19, %20 : vector<8x128xi1>
    %cst = arith.constant dense<0.000000e+00> : vector<8x128xf32>
    %22 = tpu.matmul %2, %0, %cst {dimension_numbers = #tpu.dot_dimension_numbers<[1], [0], [0], [1], [0, 0, 1, 1], [], []>} : vector<8x8xf32>, vector<8x128xf32>, vector<8x128xf32> -> vector<8x128xf32>
    %cst_13 = arith.constant 9.99999968E-21 : f32
    %23 = vector.broadcast %cst_13 : f32 to vector<8x128xf32>
    %24 = arith.maximumf %22, %23 : vector<8x128xf32>
    %25 = math.log %24 : vector<8x128xf32>
    %cst_14 = arith.constant dense<0.000000e+00> : vector<8x128xf32>
    %26 = tpu.matmul %3, %25, %cst_14 {dimension_numbers = #tpu.dot_dimension_numbers<[1], [0], [0], [1], [0, 0, 1, 1], [], []>} : vector<8x8xf32>, vector<8x128xf32>, vector<8x128xf32> -> vector<8x128xf32>
    %27 = math.exp %26 : vector<8x128xf32>
    %28 = arith.maximumf %1, %27 : vector<8x128xf32>
    %29 = arith.subf %1, %28 : vector<8x128xf32>
    %cst_15 = arith.constant 1.000000e+02 : f32
    %30 = vector.broadcast %cst_15 : f32 to vector<8x128xf32>
    %31 = arith.mulf %29, %30 : vector<8x128xf32>
    %32 = math.exp %31 : vector<8x128xf32>
    %33 = arith.subf %27, %28 : vector<8x128xf32>
    %cst_16 = arith.constant 1.000000e+02 : f32
    %34 = vector.broadcast %cst_16 : f32 to vector<8x128xf32>
    %35 = arith.mulf %33, %34 : vector<8x128xf32>
    %36 = math.exp %35 : vector<8x128xf32>
    %37 = arith.addf %32, %36 : vector<8x128xf32>
    %38 = math.log %37 : vector<8x128xf32>
    %cst_17 = arith.constant 0.00999999977 : f32
    %39 = vector.broadcast %cst_17 : f32 to vector<8x128xf32>
    %40 = arith.mulf %39, %38 : vector<8x128xf32>
    %41 = arith.addf %28, %40 : vector<8x128xf32>
    %cst_18 = arith.constant 0.000000e+00 : f32
    %42 = vector.broadcast %cst_18 : f32 to vector<8x128xf32>
    %43 = arith.select %21, %41, %42 : vector<8x128xi1>, vector<8x128xf32>
    %44 = vector.shape_cast %43 : vector<8x128xf32> to vector<1x8x128xf32>
    %cst_19 = arith.constant dense<0xFF800000> : vector<1xf32>
    %45 = vector.multi_reduction <maximumf>, %44, %cst_19 [1, 2] : vector<1x8x128xf32> to vector<1xf32>
    %46 = vector.shape_cast %45 : vector<1xf32> to vector<1x1x1xf32>
    %47 = vector.extract %46[0, 0, 0] : f32 from vector<1x1x1xf32>
    %48 = vector.broadcast %47 : f32 to vector<1x1xf32>
    %cst_20 = arith.constant 1.000000e+00 : f32
    %49 = vector.broadcast %cst_20 : f32 to vector<1x1xf32>
    %50 = arith.cmpf ogt, %48, %49 : vector<1x1xf32>
    %51 = tpu.reciprocal %48 : vector<1x1xf32> -> vector<1x1xf32>
    %cst_21 = arith.constant 1.000000e+00 : f32
    %52 = vector.broadcast %cst_21 : f32 to vector<1x1xf32>
    %53 = arith.select %50, %51, %52 : vector<1x1xi1>, vector<1x1xf32>
    %54 = vector.broadcast %53 : vector<1x1xf32> to vector<8x128xf32>
    %55 = arith.mulf %41, %54 : vector<8x128xf32>
    %cst_22 = arith.constant dense<0.000000e+00> : vector<8x128xf32>
    %56 = tpu.matmul %4, %55, %cst_22 {dimension_numbers = #tpu.dot_dimension_numbers<[1], [0], [0], [1], [0, 0, 1, 1], [], []>} : vector<8x8xf32>, vector<8x128xf32>, vector<8x128xf32> -> vector<8x128xf32>
    %57 = vector.broadcast %6 : vector<8x1xf32> to vector<8x128xf32>
    %58 = arith.mulf %57, %56 : vector<8x128xf32>
    %59 = vector.shape_cast %58 : vector<8x128xf32> to vector<1x8x128xf32>
    %cst_23 = arith.constant dense<0xFF800000> : vector<1xf32>
    %60 = vector.multi_reduction <maximumf>, %59, %cst_23 [1, 2] : vector<1x8x128xf32> to vector<1xf32>
    %61 = vector.shape_cast %60 : vector<1xf32> to vector<1x1x1xf32>
    %62 = vector.extract %61[0, 0, 0] : f32 from vector<1x1x1xf32>
    %63 = vector.broadcast %62 : f32 to vector<1x1xf32>
    %cst_24 = arith.constant 0.000000e+00 : f32
    %64 = vector.broadcast %cst_24 : f32 to vector<1x1xf32>
    %65 = arith.maximumf %63, %64 : vector<1x1xf32>
    %66 = vector.broadcast %65 : vector<1x1xf32> to vector<8x128xf32>
    %67 = arith.subf %58, %66 : vector<8x128xf32>
    %cst_25 = arith.constant 66.6666641 : f32
    %68 = vector.broadcast %cst_25 : f32 to vector<8x128xf32>
    %69 = arith.mulf %67, %68 : vector<8x128xf32>
    %70 = math.exp %69 : vector<8x128xf32>
    %cst_26 = arith.constant dense<0.000000e+00> : vector<8x128xf32>
    %71 = tpu.matmul %5, %70, %cst_26 {dimension_numbers = #tpu.dot_dimension_numbers<[1], [0], [0], [1], [0, 0, 1, 1], [], []>} : vector<8x8xf32>, vector<8x128xf32>, vector<8x128xf32> -> vector<8x128xf32>
    %cst_27 = arith.constant 0.000000e+00 : f32
    %72 = vector.broadcast %cst_27 : f32 to vector<1x1xf32>
    %73 = arith.subf %72, %65 : vector<1x1xf32>
    %cst_28 = arith.constant 66.6666641 : f32
    %74 = vector.broadcast %cst_28 : f32 to vector<1x1xf32>
    %75 = arith.mulf %73, %74 : vector<1x1xf32>
    %76 = math.exp %75 : vector<1x1xf32>
    %cst_29 = arith.constant 9.99999974E-5 : f32
    %77 = vector.broadcast %cst_29 : f32 to vector<1x1xf32>
    %78 = arith.mulf %77, %76 : vector<1x1xf32>
    %79 = vector.broadcast %78 : vector<1x1xf32> to vector<8x128xf32>
    %80 = arith.addf %71, %79 : vector<8x128xf32>
    %81 = math.log %80 : vector<8x128xf32>
    %cst_30 = arith.constant 1.500000e-02 : f32
    %82 = vector.broadcast %cst_30 : f32 to vector<8x128xf32>
    %83 = arith.mulf %82, %81 : vector<8x128xf32>
    %84 = vector.broadcast %65 : vector<1x1xf32> to vector<8x128xf32>
    %85 = arith.addf %84, %83 : vector<8x128xf32>
    %cst_31 = arith.constant 0.000000e+00 : f32
    %86 = vector.broadcast %cst_31 : f32 to vector<8x128xf32>
    %87 = arith.select %15, %85, %86 : vector<8x128xi1>, vector<8x128xf32>
    %88 = vector.shape_cast %87 : vector<8x128xf32> to vector<1x8x128xf32>
    %cst_32 = arith.constant dense<0xFF800000> : vector<1xf32>
    %89 = vector.multi_reduction <maximumf>, %88, %cst_32 [1, 2] : vector<1x8x128xf32> to vector<1xf32>
    %90 = vector.shape_cast %89 : vector<1xf32> to vector<1x1x1xf32>
    %91 = vector.extract %90[0, 0, 0] : f32 from vector<1x1x1xf32>
    %92 = vector.broadcast %91 : f32 to vector<1x1xf32>
    %cst_33 = arith.constant 1.000000e+00 : f32
    %93 = vector.broadcast %cst_33 : f32 to vector<1x1xf32>
    %94 = arith.cmpf ogt, %92, %93 : vector<1x1xf32>
    %95 = tpu.reciprocal %92 : vector<1x1xf32> -> vector<1x1xf32>
    %cst_34 = arith.constant 1.000000e+00 : f32
    %96 = vector.broadcast %cst_34 : f32 to vector<1x1xf32>
    %97 = arith.select %94, %95, %96 : vector<1x1xi1>, vector<1x1xf32>
    %98 = vector.broadcast %97 : vector<1x1xf32> to vector<8x128xf32>
    %99 = arith.mulf %85, %98 : vector<8x128xf32>
    %100 = arith.maximumf %0, %99 : vector<8x128xf32>
    %101 = arith.subf %0, %100 : vector<8x128xf32>
    %cst_35 = arith.constant 1.000000e+02 : f32
    %102 = vector.broadcast %cst_35 : f32 to vector<8x128xf32>
    %103 = arith.mulf %101, %102 : vector<8x128xf32>
    %104 = math.exp %103 : vector<8x128xf32>
    %105 = arith.subf %99, %100 : vector<8x128xf32>
    %cst_36 = arith.constant 1.000000e+02 : f32
    %106 = vector.broadcast %cst_36 : f32 to vector<8x128xf32>
    %107 = arith.mulf %105, %106 : vector<8x128xf32>
    %108 = math.exp %107 : vector<8x128xf32>
    %109 = arith.addf %104, %108 : vector<8x128xf32>
    %110 = math.log %109 : vector<8x128xf32>
    %cst_37 = arith.constant 0.00999999977 : f32
    %111 = vector.broadcast %cst_37 : f32 to vector<8x128xf32>
    %112 = arith.mulf %111, %110 : vector<8x128xf32>
    %113 = arith.addf %100, %112 : vector<8x128xf32>
    %cst_38 = arith.constant 0.000000e+00 : f32
    %114 = vector.broadcast %cst_38 : f32 to vector<8x128xf32>
    %115 = arith.select %15, %113, %114 : vector<8x128xi1>, vector<8x128xf32>
    %116 = vector.shape_cast %115 : vector<8x128xf32> to vector<1x8x128xf32>
    %cst_39 = arith.constant dense<0xFF800000> : vector<1xf32>
    %117 = vector.multi_reduction <maximumf>, %116, %cst_39 [1, 2] : vector<1x8x128xf32> to vector<1xf32>
    %118 = vector.shape_cast %117 : vector<1xf32> to vector<1x1x1xf32>
    %119 = vector.extract %118[0, 0, 0] : f32 from vector<1x1x1xf32>
    %120 = vector.broadcast %119 : f32 to vector<1x1xf32>
    %cst_40 = arith.constant 1.000000e+00 : f32
    %121 = vector.broadcast %cst_40 : f32 to vector<1x1xf32>
    %122 = arith.cmpf ogt, %120, %121 : vector<1x1xf32>
    %123 = tpu.reciprocal %120 : vector<1x1xf32> -> vector<1x1xf32>
    %cst_41 = arith.constant 1.000000e+00 : f32
    %124 = vector.broadcast %cst_41 : f32 to vector<1x1xf32>
    %125 = arith.select %122, %123, %124 : vector<1x1xi1>, vector<1x1xf32>
    %126 = vector.broadcast %125 : vector<1x1xf32> to vector<8x128xf32>
    %127 = arith.mulf %113, %126 : vector<8x128xf32>
    %cst_42 = arith.constant dense<0.000000e+00> : vector<8x128xf32>
    %128 = tpu.matmul %2, %127, %cst_42 {dimension_numbers = #tpu.dot_dimension_numbers<[1], [0], [0], [1], [0, 0, 1, 1], [], []>} : vector<8x8xf32>, vector<8x128xf32>, vector<8x128xf32> -> vector<8x128xf32>
    %cst_43 = arith.constant 9.99999968E-21 : f32
    %129 = vector.broadcast %cst_43 : f32 to vector<8x128xf32>
    %130 = arith.maximumf %128, %129 : vector<8x128xf32>
    %131 = math.log %130 : vector<8x128xf32>
    %cst_44 = arith.constant dense<0.000000e+00> : vector<8x128xf32>
    %132 = tpu.matmul %3, %131, %cst_44 {dimension_numbers = #tpu.dot_dimension_numbers<[1], [0], [0], [1], [0, 0, 1, 1], [], []>} : vector<8x8xf32>, vector<8x128xf32>, vector<8x128xf32> -> vector<8x128xf32>
    %133 = math.exp %132 : vector<8x128xf32>
    %134 = arith.maximumf %55, %133 : vector<8x128xf32>
    %135 = arith.subf %55, %134 : vector<8x128xf32>
    %cst_45 = arith.constant 1.000000e+02 : f32
    %136 = vector.broadcast %cst_45 : f32 to vector<8x128xf32>
    %137 = arith.mulf %135, %136 : vector<8x128xf32>
    %138 = math.exp %137 : vector<8x128xf32>
    %139 = arith.subf %133, %134 : vector<8x128xf32>
    %cst_46 = arith.constant 1.000000e+02 : f32
    %140 = vector.broadcast %cst_46 : f32 to vector<8x128xf32>
    %141 = arith.mulf %139, %140 : vector<8x128xf32>
    %142 = math.exp %141 : vector<8x128xf32>
    %143 = arith.addf %138, %142 : vector<8x128xf32>
    %144 = math.log %143 : vector<8x128xf32>
    %cst_47 = arith.constant 0.00999999977 : f32
    %145 = vector.broadcast %cst_47 : f32 to vector<8x128xf32>
    %146 = arith.mulf %145, %144 : vector<8x128xf32>
    %147 = arith.addf %134, %146 : vector<8x128xf32>
    %cst_48 = arith.constant 0.000000e+00 : f32
    %148 = vector.broadcast %cst_48 : f32 to vector<8x128xf32>
    %149 = arith.select %21, %147, %148 : vector<8x128xi1>, vector<8x128xf32>
    %150 = vector.shape_cast %149 : vector<8x128xf32> to vector<1x8x128xf32>
    %cst_49 = arith.constant dense<0xFF800000> : vector<1xf32>
    %151 = vector.multi_reduction <maximumf>, %150, %cst_49 [1, 2] : vector<1x8x128xf32> to vector<1xf32>
    %152 = vector.shape_cast %151 : vector<1xf32> to vector<1x1x1xf32>
    %153 = vector.extract %152[0, 0, 0] : f32 from vector<1x1x1xf32>
    %154 = vector.broadcast %153 : f32 to vector<1x1xf32>
    %cst_50 = arith.constant 1.000000e+00 : f32
    %155 = vector.broadcast %cst_50 : f32 to vector<1x1xf32>
    %156 = arith.cmpf ogt, %154, %155 : vector<1x1xf32>
    %157 = tpu.reciprocal %154 : vector<1x1xf32> -> vector<1x1xf32>
    %cst_51 = arith.constant 1.000000e+00 : f32
    %158 = vector.broadcast %cst_51 : f32 to vector<1x1xf32>
    %159 = arith.select %156, %157, %158 : vector<1x1xi1>, vector<1x1xf32>
    %160 = vector.broadcast %159 : vector<1x1xf32> to vector<8x128xf32>
    %161 = arith.mulf %147, %160 : vector<8x128xf32>
    %cst_52 = arith.constant dense<0.000000e+00> : vector<8x128xf32>
    %162 = tpu.matmul %4, %161, %cst_52 {dimension_numbers = #tpu.dot_dimension_numbers<[1], [0], [0], [1], [0, 0, 1, 1], [], []>} : vector<8x8xf32>, vector<8x128xf32>, vector<8x128xf32> -> vector<8x128xf32>
    %163 = vector.broadcast %6 : vector<8x1xf32> to vector<8x128xf32>
    %164 = arith.mulf %163, %162 : vector<8x128xf32>
    %165 = vector.shape_cast %164 : vector<8x128xf32> to vector<1x8x128xf32>
    %cst_53 = arith.constant dense<0xFF800000> : vector<1xf32>
    %166 = vector.multi_reduction <maximumf>, %165, %cst_53 [1, 2] : vector<1x8x128xf32> to vector<1xf32>
    %167 = vector.shape_cast %166 : vector<1xf32> to vector<1x1x1xf32>
    %168 = vector.extract %167[0, 0, 0] : f32 from vector<1x1x1xf32>
    %169 = vector.broadcast %168 : f32 to vector<1x1xf32>
    %cst_54 = arith.constant 0.000000e+00 : f32
    %170 = vector.broadcast %cst_54 : f32 to vector<1x1xf32>
    %171 = arith.maximumf %169, %170 : vector<1x1xf32>
    %172 = vector.broadcast %171 : vector<1x1xf32> to vector<8x128xf32>
    %173 = arith.subf %164, %172 : vector<8x128xf32>
    %cst_55 = arith.constant 66.6666641 : f32
    %174 = vector.broadcast %cst_55 : f32 to vector<8x128xf32>
    %175 = arith.mulf %173, %174 : vector<8x128xf32>
    %176 = math.exp %175 : vector<8x128xf32>
    %cst_56 = arith.constant dense<0.000000e+00> : vector<8x128xf32>
    %177 = tpu.matmul %5, %176, %cst_56 {dimension_numbers = #tpu.dot_dimension_numbers<[1], [0], [0], [1], [0, 0, 1, 1], [], []>} : vector<8x8xf32>, vector<8x128xf32>, vector<8x128xf32> -> vector<8x128xf32>
    %cst_57 = arith.constant 0.000000e+00 : f32
    %178 = vector.broadcast %cst_57 : f32 to vector<1x1xf32>
    %179 = arith.subf %178, %171 : vector<1x1xf32>
    %cst_58 = arith.constant 66.6666641 : f32
    %180 = vector.broadcast %cst_58 : f32 to vector<1x1xf32>
    %181 = arith.mulf %179, %180 : vector<1x1xf32>
    %182 = math.exp %181 : vector<1x1xf32>
    %cst_59 = arith.constant 9.99999974E-5 : f32
    %183 = vector.broadcast %cst_59 : f32 to vector<1x1xf32>
    %184 = arith.mulf %183, %182 : vector<1x1xf32>
    %185 = vector.broadcast %184 : vector<1x1xf32> to vector<8x128xf32>
    %186 = arith.addf %177, %185 : vector<8x128xf32>
    %187 = math.log %186 : vector<8x128xf32>
    %cst_60 = arith.constant 1.500000e-02 : f32
    %188 = vector.broadcast %cst_60 : f32 to vector<8x128xf32>
    %189 = arith.mulf %188, %187 : vector<8x128xf32>
    %190 = vector.broadcast %171 : vector<1x1xf32> to vector<8x128xf32>
    %191 = arith.addf %190, %189 : vector<8x128xf32>
    %cst_61 = arith.constant 0.000000e+00 : f32
    %192 = vector.broadcast %cst_61 : f32 to vector<8x128xf32>
    %193 = arith.select %15, %191, %192 : vector<8x128xi1>, vector<8x128xf32>
    %194 = vector.shape_cast %193 : vector<8x128xf32> to vector<1x8x128xf32>
    %cst_62 = arith.constant dense<0xFF800000> : vector<1xf32>
    %195 = vector.multi_reduction <maximumf>, %194, %cst_62 [1, 2] : vector<1x8x128xf32> to vector<1xf32>
    %196 = vector.shape_cast %195 : vector<1xf32> to vector<1x1x1xf32>
    %197 = vector.extract %196[0, 0, 0] : f32 from vector<1x1x1xf32>
    %198 = vector.broadcast %197 : f32 to vector<1x1xf32>
    %cst_63 = arith.constant 1.000000e+00 : f32
    %199 = vector.broadcast %cst_63 : f32 to vector<1x1xf32>
    %200 = arith.cmpf ogt, %198, %199 : vector<1x1xf32>
    %201 = tpu.reciprocal %198 : vector<1x1xf32> -> vector<1x1xf32>
    %cst_64 = arith.constant 1.000000e+00 : f32
    %202 = vector.broadcast %cst_64 : f32 to vector<1x1xf32>
    %203 = arith.select %200, %201, %202 : vector<1x1xi1>, vector<1x1xf32>
    %204 = vector.broadcast %203 : vector<1x1xf32> to vector<8x128xf32>
    %205 = arith.mulf %191, %204 : vector<8x128xf32>
    %206 = arith.maximumf %127, %205 : vector<8x128xf32>
    %207 = arith.subf %127, %206 : vector<8x128xf32>
    %cst_65 = arith.constant 1.000000e+02 : f32
    %208 = vector.broadcast %cst_65 : f32 to vector<8x128xf32>
    %209 = arith.mulf %207, %208 : vector<8x128xf32>
    %210 = math.exp %209 : vector<8x128xf32>
    %211 = arith.subf %205, %206 : vector<8x128xf32>
    %cst_66 = arith.constant 1.000000e+02 : f32
    %212 = vector.broadcast %cst_66 : f32 to vector<8x128xf32>
    %213 = arith.mulf %211, %212 : vector<8x128xf32>
    %214 = math.exp %213 : vector<8x128xf32>
    %215 = arith.addf %210, %214 : vector<8x128xf32>
    %216 = math.log %215 : vector<8x128xf32>
    %cst_67 = arith.constant 0.00999999977 : f32
    %217 = vector.broadcast %cst_67 : f32 to vector<8x128xf32>
    %218 = arith.mulf %217, %216 : vector<8x128xf32>
    %219 = arith.addf %206, %218 : vector<8x128xf32>
    %cst_68 = arith.constant 0.000000e+00 : f32
    %220 = vector.broadcast %cst_68 : f32 to vector<8x128xf32>
    %221 = arith.select %15, %219, %220 : vector<8x128xi1>, vector<8x128xf32>
    %222 = vector.shape_cast %221 : vector<8x128xf32> to vector<1x8x128xf32>
    %cst_69 = arith.constant dense<0xFF800000> : vector<1xf32>
    %223 = vector.multi_reduction <maximumf>, %222, %cst_69 [1, 2] : vector<1x8x128xf32> to vector<1xf32>
    %224 = vector.shape_cast %223 : vector<1xf32> to vector<1x1x1xf32>
    %225 = vector.extract %224[0, 0, 0] : f32 from vector<1x1x1xf32>
    %226 = vector.broadcast %225 : f32 to vector<1x1xf32>
    %cst_70 = arith.constant 1.000000e+00 : f32
    %227 = vector.broadcast %cst_70 : f32 to vector<1x1xf32>
    %228 = arith.cmpf ogt, %226, %227 : vector<1x1xf32>
    %229 = tpu.reciprocal %226 : vector<1x1xf32> -> vector<1x1xf32>
    %cst_71 = arith.constant 1.000000e+00 : f32
    %230 = vector.broadcast %cst_71 : f32 to vector<1x1xf32>
    %231 = arith.select %228, %229, %230 : vector<1x1xi1>, vector<1x1xf32>
    %232 = vector.broadcast %231 : vector<1x1xf32> to vector<8x128xf32>
    %233 = arith.mulf %219, %232 : vector<8x128xf32>
    %cst_72 = arith.constant dense<0.000000e+00> : vector<8x128xf32>
    %234 = tpu.matmul %2, %233, %cst_72 {dimension_numbers = #tpu.dot_dimension_numbers<[1], [0], [0], [1], [0, 0, 1, 1], [], []>} : vector<8x8xf32>, vector<8x128xf32>, vector<8x128xf32> -> vector<8x128xf32>
    %cst_73 = arith.constant 9.99999968E-21 : f32
    %235 = vector.broadcast %cst_73 : f32 to vector<8x128xf32>
    %236 = arith.maximumf %234, %235 : vector<8x128xf32>
    %237 = math.log %236 : vector<8x128xf32>
    %cst_74 = arith.constant dense<0.000000e+00> : vector<8x128xf32>
    %238 = tpu.matmul %3, %237, %cst_74 {dimension_numbers = #tpu.dot_dimension_numbers<[1], [0], [0], [1], [0, 0, 1, 1], [], []>} : vector<8x8xf32>, vector<8x128xf32>, vector<8x128xf32> -> vector<8x128xf32>
    %239 = math.exp %238 : vector<8x128xf32>
    %240 = arith.maximumf %161, %239 : vector<8x128xf32>
    %241 = arith.subf %161, %240 : vector<8x128xf32>
    %cst_75 = arith.constant 1.000000e+02 : f32
    %242 = vector.broadcast %cst_75 : f32 to vector<8x128xf32>
    %243 = arith.mulf %241, %242 : vector<8x128xf32>
    %244 = math.exp %243 : vector<8x128xf32>
    %245 = arith.subf %239, %240 : vector<8x128xf32>
    %cst_76 = arith.constant 1.000000e+02 : f32
    %246 = vector.broadcast %cst_76 : f32 to vector<8x128xf32>
    %247 = arith.mulf %245, %246 : vector<8x128xf32>
    %248 = math.exp %247 : vector<8x128xf32>
    %249 = arith.addf %244, %248 : vector<8x128xf32>
    %250 = math.log %249 : vector<8x128xf32>
    %cst_77 = arith.constant 0.00999999977 : f32
    %251 = vector.broadcast %cst_77 : f32 to vector<8x128xf32>
    %252 = arith.mulf %251, %250 : vector<8x128xf32>
    %253 = arith.addf %240, %252 : vector<8x128xf32>
    %cst_78 = arith.constant 0.000000e+00 : f32
    %254 = vector.broadcast %cst_78 : f32 to vector<8x128xf32>
    %255 = arith.select %21, %253, %254 : vector<8x128xi1>, vector<8x128xf32>
    %256 = vector.shape_cast %255 : vector<8x128xf32> to vector<1x8x128xf32>
    %cst_79 = arith.constant dense<0xFF800000> : vector<1xf32>
    %257 = vector.multi_reduction <maximumf>, %256, %cst_79 [1, 2] : vector<1x8x128xf32> to vector<1xf32>
    %258 = vector.shape_cast %257 : vector<1xf32> to vector<1x1x1xf32>
    %259 = vector.extract %258[0, 0, 0] : f32 from vector<1x1x1xf32>
    %260 = vector.broadcast %259 : f32 to vector<1x1xf32>
    %cst_80 = arith.constant 1.000000e+00 : f32
    %261 = vector.broadcast %cst_80 : f32 to vector<1x1xf32>
    %262 = arith.cmpf ogt, %260, %261 : vector<1x1xf32>
    %263 = tpu.reciprocal %260 : vector<1x1xf32> -> vector<1x1xf32>
    %cst_81 = arith.constant 1.000000e+00 : f32
    %264 = vector.broadcast %cst_81 : f32 to vector<1x1xf32>
    %265 = arith.select %262, %263, %264 : vector<1x1xi1>, vector<1x1xf32>
    %266 = vector.broadcast %265 : vector<1x1xf32> to vector<8x128xf32>
    %267 = arith.mulf %253, %266 : vector<8x128xf32>
    %cst_82 = arith.constant dense<0.000000e+00> : vector<8x128xf32>
    %268 = tpu.matmul %4, %267, %cst_82 {dimension_numbers = #tpu.dot_dimension_numbers<[1], [0], [0], [1], [0, 0, 1, 1], [], []>} : vector<8x8xf32>, vector<8x128xf32>, vector<8x128xf32> -> vector<8x128xf32>
    %269 = vector.broadcast %6 : vector<8x1xf32> to vector<8x128xf32>
    %270 = arith.mulf %269, %268 : vector<8x128xf32>
    %271 = vector.shape_cast %270 : vector<8x128xf32> to vector<1x8x128xf32>
    %cst_83 = arith.constant dense<0xFF800000> : vector<1xf32>
    %272 = vector.multi_reduction <maximumf>, %271, %cst_83 [1, 2] : vector<1x8x128xf32> to vector<1xf32>
    %273 = vector.shape_cast %272 : vector<1xf32> to vector<1x1x1xf32>
    %274 = vector.extract %273[0, 0, 0] : f32 from vector<1x1x1xf32>
    %275 = vector.broadcast %274 : f32 to vector<1x1xf32>
    %cst_84 = arith.constant 0.000000e+00 : f32
    %276 = vector.broadcast %cst_84 : f32 to vector<1x1xf32>
    %277 = arith.maximumf %275, %276 : vector<1x1xf32>
    %278 = vector.broadcast %277 : vector<1x1xf32> to vector<8x128xf32>
    %279 = arith.subf %270, %278 : vector<8x128xf32>
    %cst_85 = arith.constant 66.6666641 : f32
    %280 = vector.broadcast %cst_85 : f32 to vector<8x128xf32>
    %281 = arith.mulf %279, %280 : vector<8x128xf32>
    %282 = math.exp %281 : vector<8x128xf32>
    %cst_86 = arith.constant dense<0.000000e+00> : vector<8x128xf32>
    %283 = tpu.matmul %5, %282, %cst_86 {dimension_numbers = #tpu.dot_dimension_numbers<[1], [0], [0], [1], [0, 0, 1, 1], [], []>} : vector<8x8xf32>, vector<8x128xf32>, vector<8x128xf32> -> vector<8x128xf32>
    %cst_87 = arith.constant 0.000000e+00 : f32
    %284 = vector.broadcast %cst_87 : f32 to vector<1x1xf32>
    %285 = arith.subf %284, %277 : vector<1x1xf32>
    %cst_88 = arith.constant 66.6666641 : f32
    %286 = vector.broadcast %cst_88 : f32 to vector<1x1xf32>
    %287 = arith.mulf %285, %286 : vector<1x1xf32>
    %288 = math.exp %287 : vector<1x1xf32>
    %cst_89 = arith.constant 9.99999974E-5 : f32
    %289 = vector.broadcast %cst_89 : f32 to vector<1x1xf32>
    %290 = arith.mulf %289, %288 : vector<1x1xf32>
    %291 = vector.broadcast %290 : vector<1x1xf32> to vector<8x128xf32>
    %292 = arith.addf %283, %291 : vector<8x128xf32>
    %293 = math.log %292 : vector<8x128xf32>
    %cst_90 = arith.constant 1.500000e-02 : f32
    %294 = vector.broadcast %cst_90 : f32 to vector<8x128xf32>
    %295 = arith.mulf %294, %293 : vector<8x128xf32>
    %296 = vector.broadcast %277 : vector<1x1xf32> to vector<8x128xf32>
    %297 = arith.addf %296, %295 : vector<8x128xf32>
    %cst_91 = arith.constant 0.000000e+00 : f32
    %298 = vector.broadcast %cst_91 : f32 to vector<8x128xf32>
    %299 = arith.select %15, %297, %298 : vector<8x128xi1>, vector<8x128xf32>
    %300 = vector.shape_cast %299 : vector<8x128xf32> to vector<1x8x128xf32>
    %cst_92 = arith.constant dense<0xFF800000> : vector<1xf32>
    %301 = vector.multi_reduction <maximumf>, %300, %cst_92 [1, 2] : vector<1x8x128xf32> to vector<1xf32>
    %302 = vector.shape_cast %301 : vector<1xf32> to vector<1x1x1xf32>
    %303 = vector.extract %302[0, 0, 0] : f32 from vector<1x1x1xf32>
    %304 = vector.broadcast %303 : f32 to vector<1x1xf32>
    %cst_93 = arith.constant 1.000000e+00 : f32
    %305 = vector.broadcast %cst_93 : f32 to vector<1x1xf32>
    %306 = arith.cmpf ogt, %304, %305 : vector<1x1xf32>
    %307 = tpu.reciprocal %304 : vector<1x1xf32> -> vector<1x1xf32>
    %cst_94 = arith.constant 1.000000e+00 : f32
    %308 = vector.broadcast %cst_94 : f32 to vector<1x1xf32>
    %309 = arith.select %306, %307, %308 : vector<1x1xi1>, vector<1x1xf32>
    %310 = vector.broadcast %309 : vector<1x1xf32> to vector<8x128xf32>
    %311 = arith.mulf %297, %310 : vector<8x128xf32>
    %312 = arith.maximumf %233, %311 : vector<8x128xf32>
    %313 = arith.subf %233, %312 : vector<8x128xf32>
    %cst_95 = arith.constant 1.000000e+02 : f32
    %314 = vector.broadcast %cst_95 : f32 to vector<8x128xf32>
    %315 = arith.mulf %313, %314 : vector<8x128xf32>
    %316 = math.exp %315 : vector<8x128xf32>
    %317 = arith.subf %311, %312 : vector<8x128xf32>
    %cst_96 = arith.constant 1.000000e+02 : f32
    %318 = vector.broadcast %cst_96 : f32 to vector<8x128xf32>
    %319 = arith.mulf %317, %318 : vector<8x128xf32>
    %320 = math.exp %319 : vector<8x128xf32>
    %321 = arith.addf %316, %320 : vector<8x128xf32>
    %322 = math.log %321 : vector<8x128xf32>
    %cst_97 = arith.constant 0.00999999977 : f32
    %323 = vector.broadcast %cst_97 : f32 to vector<8x128xf32>
    %324 = arith.mulf %323, %322 : vector<8x128xf32>
    %325 = arith.addf %312, %324 : vector<8x128xf32>
    %cst_98 = arith.constant 0.000000e+00 : f32
    %326 = vector.broadcast %cst_98 : f32 to vector<8x128xf32>
    %327 = arith.select %15, %325, %326 : vector<8x128xi1>, vector<8x128xf32>
    %328 = vector.shape_cast %327 : vector<8x128xf32> to vector<1x8x128xf32>
    %cst_99 = arith.constant dense<0xFF800000> : vector<1xf32>
    %329 = vector.multi_reduction <maximumf>, %328, %cst_99 [1, 2] : vector<1x8x128xf32> to vector<1xf32>
    %330 = vector.shape_cast %329 : vector<1xf32> to vector<1x1x1xf32>
    %331 = vector.extract %330[0, 0, 0] : f32 from vector<1x1x1xf32>
    %332 = vector.broadcast %331 : f32 to vector<1x1xf32>
    %cst_100 = arith.constant 1.000000e+00 : f32
    %333 = vector.broadcast %cst_100 : f32 to vector<1x1xf32>
    %334 = arith.cmpf ogt, %332, %333 : vector<1x1xf32>
    %335 = tpu.reciprocal %332 : vector<1x1xf32> -> vector<1x1xf32>
    %cst_101 = arith.constant 1.000000e+00 : f32
    %336 = vector.broadcast %cst_101 : f32 to vector<1x1xf32>
    %337 = arith.select %334, %335, %336 : vector<1x1xi1>, vector<1x1xf32>
    %338 = vector.broadcast %337 : vector<1x1xf32> to vector<8x128xf32>
    %339 = arith.mulf %325, %338 : vector<8x128xf32>
    %c0_102 = arith.constant 0 : index
    %c0_103 = arith.constant 0 : index
    %340 = vector.load %arg7[%c0_102, %c0_103] : memref<8x128xf32, #tpu.memory_space<vmem>>, vector<8x128xf32>
    tpu.vector_store %arg7[%c0_102, %c0_103], %339 {strides = array<i32>} : memref<8x128xf32, #tpu.memory_space<vmem>>, vector<8x128xf32>,
    return
  }
}

</mosaic_0001>

<llo_original>
// kernel: tpu_custom_call.1
$region0: #{tpu_custom_call.1}
  #allocation0 [shape = 'u32[]', space=smem, size = 0x4, offset = 0x4, fixed_abs, tag = 'smem constant byte address 0x4 - core index']
  #allocation1 [shape = 'u32[144,128]{1,0:T(1,128)}', space=vmem, size = 0x12000, scoped, tag = 'internal scratch']
  %s0 = inlined_call_operand.vmem [shape: f32[8,128], index: 0, kind: input, shape index: {}]
  %s1 = inlined_call_operand.hbm [shape: f32[8,128], index: 1, kind: input, shape index: {}]
  %s2 = inlined_call_operand.vmem [shape: f32[8,8], index: 2, kind: input, shape index: {}]
  %s3 = inlined_call_operand.hbm [shape: f32[8,8], index: 3, kind: input, shape index: {}]
  %s4 = inlined_call_operand.vmem [shape: f32[8,8], index: 4, kind: input, shape index: {}]
  %s5 = inlined_call_operand.hbm [shape: f32[8,8], index: 5, kind: input, shape index: {}]
  %s6 = inlined_call_operand.vmem [shape: f32[8,1], index: 6, kind: input, shape index: {}]
  %s7 = inlined_call_operand.hbm [shape: f32[8,128], index: 7, kind: output, shape index: {}]
  %s8 = sld [smem:[#allocation0]]
  $region50: #{tpu_custom_call.1} parent=0
    _
  %s10 = ssub.s32 1, %s8
  %s11 = scalar_select 0, %s10, %s8
  $region1: #{tpu_custom_call.1} parent=0
    #allocation2 [shape = 'u8[4096]{0}', space=vmem, size = 0x1000, scoped, tag = 'input window, operand 1, single buffered']
    #allocation3 [shape = 's32[1]{0}', space=sflag, size = 0x4, scoped, tag = 'scoped memory for tpu_custom_call.1']
    #allocation4 [shape = 's32[1]{0}', space=sflag, size = 0x4, scoped, tag = 'scoped memory for tpu_custom_call.1']
    #allocation5 [shape = 'u8[4096]{0}', space=vmem, size = 0x1000, scoped, tag = 'input window, operand 3, single buffered']
    #allocation6 [shape = 's32[1]{0}', space=sflag, size = 0x4, scoped, tag = 'scoped memory for tpu_custom_call.1']
    #allocation7 [shape = 'u8[4096]{0}', space=vmem, size = 0x1000, scoped, tag = 'input window, operand 5, single buffered']
    #allocation8 [shape = 'u8[4096]{0}', space=vmem, size = 0x1000, scoped, tag = 'output window, operand 0, single buffered']
    %12 = vsyncpa [#allocation3], 0
    %13 = vsyncpa [#allocation6], 0
    %14 = vsyncpa [#allocation4], 0
    // Predicated region
    $region2: #{tpu_custom_call.1} parent=1 // pred_check
      _
    $region3: #{tpu_custom_call.1} parent=1 // pred_check_branch
      %16 = sbr.rel (0) target = $region5
    $region4: #{tpu_custom_call.1} parent=1 // pred_region
      _
    $region5: #{tpu_custom_call.1} parent=1 // pred_fallthru
      _
    // Predicated region
    $region6: #{tpu_custom_call.1} parent=1 // pred_check
      _
    $region7: #{tpu_custom_call.1} parent=1 // pred_check_branch
      %18 = sbr.rel (0) target = $region9
    $region8: #{tpu_custom_call.1} parent=1 // pred_region
      %s20 = ssub.s32 128, 128
      %21 = vsyncadd [#allocation3], %s20
      %s23 = sshll.u32 [#allocation2], 4
      %s24 = int_to_ptr.vmem [resolvable:$true] %s23
      %26 = dma.hbm_to_vmem [thread:$0]  %s1, 128, %s24, [#allocation3]
    $region9: #{tpu_custom_call.1} parent=1 // pred_fallthru
      _
    // Predicated region
    $region10: #{tpu_custom_call.1} parent=1 // pred_check
      _
    $region11: #{tpu_custom_call.1} parent=1 // pred_check_branch
      %28 = sbr.rel (0) target = $region13
    $region12: #{tpu_custom_call.1} parent=1 // pred_region
      _
    $region13: #{tpu_custom_call.1} parent=1 // pred_fallthru
      _
    // Predicated region
    $region14: #{tpu_custom_call.1} parent=1 // pred_check
      _
    $region15: #{tpu_custom_call.1} parent=1 // pred_check_branch
      %30 = sbr.rel (0) target = $region17
    $region16: #{tpu_custom_call.1} parent=1 // pred_region
      %s32 = ssub.s32 128, 128
      %33 = vsyncadd [#allocation6], %s32
      %s35 = sshll.u32 [#allocation5], 4
      %s36 = int_to_ptr.vmem [resolvable:$true] %s35
      %38 = dma.hbm_to_vmem [thread:$0]  %s3, 128, %s36, [#allocation6]
    $region17: #{tpu_custom_call.1} parent=1 // pred_fallthru
      _
    // Predicated region
    $region18: #{tpu_custom_call.1} parent=1 // pred_check
      _
    $region19: #{tpu_custom_call.1} parent=1 // pred_check_branch
      %40 = sbr.rel (0) target = $region21
    $region20: #{tpu_custom_call.1} parent=1 // pred_region
      _
    $region21: #{tpu_custom_call.1} parent=1 // pred_fallthru
      _
    // Predicated region
    $region22: #{tpu_custom_call.1} parent=1 // pred_check
      _
    $region23: #{tpu_custom_call.1} parent=1 // pred_check_branch
      %42 = sbr.rel (0) target = $region25
    $region24: #{tpu_custom_call.1} parent=1 // pred_region
      %s44 = ssub.s32 128, 128
      %45 = vsyncadd [#allocation6], %s44
      %s47 = sshll.u32 [#allocation7], 4
      %s48 = int_to_ptr.vmem [resolvable:$true] %s47
      %50 = dma.hbm_to_vmem [thread:$0]  %s5, 128, %s48, [#allocation6]
    $region25: #{tpu_custom_call.1} parent=1 // pred_fallthru
      _
    // Predicated region
    $region26: #{tpu_custom_call.1} parent=1 // pred_check
      _
    $region27: #{tpu_custom_call.1} parent=1 // pred_check_branch
      %52 = sbr.rel (0) target = $region29
    $region28: #{tpu_custom_call.1} parent=1 // pred_region
      _
    $region29: #{tpu_custom_call.1} parent=1 // pred_fallthru
      _
    // Predicated region
    $region30: #{tpu_custom_call.1} parent=1 // pred_check
      _
    $region31: #{tpu_custom_call.1} parent=1 // pred_check_branch
      %54 = sbr.rel (0) target = $region33
    $region32: #{tpu_custom_call.1} parent=1 // pred_region
      %55 = dma.done [#allocation3], 128
    $region33: #{tpu_custom_call.1} parent=1 // pred_fallthru
      _
    // Predicated region
    $region34: #{tpu_custom_call.1} parent=1 // pred_check
      _
    $region35: #{tpu_custom_call.1} parent=1 // pred_check_branch
      %57 = sbr.rel (0) target = $region37
    $region36: #{tpu_custom_call.1} parent=1 // pred_region
      %58 = dma.done [#allocation6], 128
    $region37: #{tpu_custom_call.1} parent=1 // pred_fallthru
      _
    // Predicated region
    $region38: #{tpu_custom_call.1} parent=1 // pred_check
      _
    $region39: #{tpu_custom_call.1} parent=1 // pred_check_branch
      %60 = sbr.rel (0) target = $region41
    $region40: #{tpu_custom_call.1} parent=1 // pred_region
      %61 = dma.done [#allocation6], 128
    $region41: #{tpu_custom_call.1} parent=1 // pred_fallthru
      _
    %v62 = vld [vmem:[%s0] sm:$0xff]
    %v63 = vld [vmem:[#allocation2] sm:$0xff]
    %v64 = vld [vmem:[%s2] sm:$0xff]
    %v65 = vld [vmem:[#allocation5] sm:$0xff]
    %v66 = vld [vmem:[%s4] sm:$0xff]
    %v67 = vld [vmem:[#allocation7] sm:$0xff]
    %v68 = vld [vmem:[%s6] sm:$0xff]
    %v69 = vlaneseq
    %v70 = vand.u32 %v69, 127
    %vm71 = vcmp.lt.s32.totalorder %v70, 2
    %v72 = vlaneseq
    %v73 = vshrl.u32 %v72, 7
    %vm74 = vcmp.lt.s32.totalorder %v73, 6
    %v75 = vsel %vm74, 1, 0
    %vm76 = vcmp.eq.s32.totalorder %v75, 1
    %v77 = vsel %vm71, 1, 0
    %vm78 = vcmp.eq.s32.totalorder %v77, 1
    %vm79 = vmand %vm76, %vm78
    %vm80 = vcmp.lt.s32.totalorder %v73, 4
    %v81 = vsel %vm80, 1, 0
    %vm82 = vcmp.eq.s32.totalorder %v81, 1
    %vm83 = vmand %vm82, %vm78
    %vm84 = vcmask 64512
    %v86 = vsel %vm84, %v64, 0
    %88 = vmatprep.subr.mxu0 0.0
    %89 = vmatpush1.msra.mxu0 %v62
    %90 = vmatprep.subr.mxu0 0.0
    %91 = vmatpush1.msra.mxu0 0.0
    %92 = vmatprep.subr.mxu0 0.0
    %93 = vmatpush1.msra.mxu0 0.0
    %94 = vmatprep.subr.mxu0 0.0
    %95 = vmatpush1.msra.mxu0 0.0
    %96 = vmatprep.subr.mxu0 0.0
    %97 = vmatpush1.msra.mxu0 0.0
    %98 = vmatprep.subr.mxu0 0.0
    %99 = vmatpush1.msra.mxu0 0.0
    %100 = vmatprep.subr.mxu0 0.0
    %101 = vmatpush1.msra.mxu0 0.0
    %102 = vmatprep.subr.mxu0 0.0
    %103 = vmatpush1.msra.mxu0 0.0
    %104 = vmatprep.subr.mxu0 0.0
    %105 = vmatpush1.msra.mxu0 0.0
    %106 = vmatprep.subr.mxu0 0.0
    %107 = vmatpush1.msra.mxu0 0.0
    %108 = vmatprep.subr.mxu0 0.0
    %109 = vmatpush1.msra.mxu0 0.0
    %110 = vmatprep.subr.mxu0 0.0
    %111 = vmatpush1.msra.mxu0 0.0
    %112 = vmatprep.subr.mxu0 0.0
    %113 = vmatpush1.msra.mxu0 0.0
    %114 = vmatprep.subr.mxu0 0.0
    %115 = vmatpush1.msra.mxu0 0.0
    %116 = vmatprep.subr.mxu0 0.0
    %117 = vmatpush1.msra.mxu0 0.0
    %118 = vmatprep.subr.mxu0 0.0
    %119 = vmatpush1.msra.mxu0 0.0
    %120 = vmatprep.subr.mxu0 0.0
    %121 = vmatpush1.msra.mxu0 0.0
    %122 = vmatprep.subr.mxu0 0.0
    %123 = vmatpush1.msra.mxu0 0.0
    %124 = vmatprep.subr.mxu0 0.0
    %125 = vmatpush1.msra.mxu0 0.0
    %126 = vmatprep.subr.mxu0 0.0
    %127 = vmatpush1.msra.mxu0 0.0
    %128 = vmatprep.subr.mxu0 0.0
    %129 = vmatpush1.msra.mxu0 0.0
    %130 = vmatprep.subr.mxu0 0.0
    %131 = vmatpush1.msra.mxu0 0.0
    %132 = vmatprep.subr.mxu0 0.0
    %133 = vmatpush1.msra.mxu0 0.0
    %134 = vmatprep.subr.mxu0 0.0
    %135 = vmatpush1.msra.mxu0 0.0
    %136 = vmatprep.subr.mxu0 0.0
    %137 = vmatpush1.msra.mxu0 0.0
    %138 = vmatprep.subr.mxu0 0.0
    %139 = vmatpush1.msra.mxu0 0.0
    %140 = vmatprep.subr.mxu0 0.0
    %141 = vmatpush1.msra.mxu0 0.0
    %142 = vmatprep.subr.mxu0 0.0
    %143 = vmatpush1.msra.mxu0 0.0
    %144 = vmatprep.subr.mxu0 0.0
    %145 = vmatpush1.msra.mxu0 0.0
    %146 = vmatprep.subr.mxu0 0.0
    %147 = vmatpush1.msra.mxu0 0.0
    %148 = vmatprep.subr.mxu0 0.0
    %149 = vmatpush1.msra.mxu0 0.0
    %150 = vmatprep.subr.mxu0 0.0
    %151 = vmatpush1.msra.mxu0 0.0
    %152 = vmatprep.mubr.f32.mxu0 0.0
    %153 = vmatmul.mubr.f32.gmra.mrb[0].mxu0 %v86
    %v154 = vpop.f32.mrb[0].mxu0
    %v155 = vadd.f32 0.0, %v154
    %v156 = vpop.f32.mrb[0].mxu0
    %157 = vdwg.mxu0
    %v158 = vmax.f32 %v155, 1e-20
    %v159 = vlog2.pop %v158
    %v160 = vmul.f32 %v159, 0.6931472
    %v162 = vsel %vm84, %v65, 0
    %164 = vmatprep.subr.mxu0 0.0
    %165 = vmatpush1.msra.mxu0 %v160
    %166 = vmatprep.subr.mxu0 0.0
    %167 = vmatpush1.msra.mxu0 0.0
    %168 = vmatprep.subr.mxu0 0.0
    %169 = vmatpush1.msra.mxu0 0.0
    %170 = vmatprep.subr.mxu0 0.0
    %171 = vmatpush1.msra.mxu0 0.0
    %172 = vmatprep.subr.mxu0 0.0
    %173 = vmatpush1.msra.mxu0 0.0
    %174 = vmatprep.subr.mxu0 0.0
    %175 = vmatpush1.msra.mxu0 0.0
    %176 = vmatprep.subr.mxu0 0.0
    %177 = vmatpush1.msra.mxu0 0.0
    %178 = vmatprep.subr.mxu0 0.0
    %179 = vmatpush1.msra.mxu0 0.0
    %180 = vmatprep.subr.mxu0 0.0
    %181 = vmatpush1.msra.mxu0 0.0
    %182 = vmatprep.subr.mxu0 0.0
    %183 = vmatpush1.msra.mxu0 0.0
    %184 = vmatprep.subr.mxu0 0.0
    %185 = vmatpush1.msra.mxu0 0.0
    %186 = vmatprep.subr.mxu0 0.0
    %187 = vmatpush1.msra.mxu0 0.0
    %188 = vmatprep.subr.mxu0 0.0
    %189 = vmatpush1.msra.mxu0 0.0
    %190 = vmatprep.subr.mxu0 0.0
    %191 = vmatpush1.msra.mxu0 0.0
    %192 = vmatprep.subr.mxu0 0.0
    %193 = vmatpush1.msra.mxu0 0.0
    %194 = vmatprep.subr.mxu0 0.0
    %195 = vmatpush1.msra.mxu0 0.0
    %196 = vmatprep.subr.mxu0 0.0
    %197 = vmatpush1.msra.mxu0 0.0
    %198 = vmatprep.subr.mxu0 0.0
    %199 = vmatpush1.msra.mxu0 0.0
    %200 = vmatprep.subr.mxu0 0.0
    %201 = vmatpush1.msra.mxu0 0.0
    %202 = vmatprep.subr.mxu0 0.0
    %203 = vmatpush1.msra.mxu0 0.0
    %204 = vmatprep.subr.mxu0 0.0
    %205 = vmatpush1.msra.mxu0 0.0
    %206 = vmatprep.subr.mxu0 0.0
    %207 = vmatpush1.msra.mxu0 0.0
    %208 = vmatprep.subr.mxu0 0.0
    %209 = vmatpush1.msra.mxu0 0.0
    %210 = vmatprep.subr.mxu0 0.0
    %211 = vmatpush1.msra.mxu0 0.0
    %212 = vmatprep.subr.mxu0 0.0
    %213 = vmatpush1.msra.mxu0 0.0
    %214 = vmatprep.subr.mxu0 0.0
    %215 = vmatpush1.msra.mxu0 0.0
    %216 = vmatprep.subr.mxu0 0.0
    %217 = vmatpush1.msra.mxu0 0.0
    %218 = vmatprep.subr.mxu0 0.0
    %219 = vmatpush1.msra.mxu0 0.0
    %220 = vmatprep.subr.mxu0 0.0
    %221 = vmatpush1.msra.mxu0 0.0
    %222 = vmatprep.subr.mxu0 0.0
    %223 = vmatpush1.msra.mxu0 0.0
    %224 = vmatprep.subr.mxu0 0.0
    %225 = vmatpush1.msra.mxu0 0.0
    %226 = vmatprep.subr.mxu0 0.0
    %227 = vmatpush1.msra.mxu0 0.0
    %228 = vmatprep.mubr.f32.mxu0 0.0
    %229 = vmatmul.mubr.f32.gmra.mrb[0].mxu0 %v162
    %v230 = vpop.f32.mrb[0].mxu0
    %v231 = vadd.f32 0.0, %v230
    %v232 = vpop.f32.mrb[0].mxu0
    %233 = vdwg.mxu0
    %v234 = vmul.f32 %v231, 1.442695
    %v235 = vpow.pop %v234
    %v236 = vmax.f32 %v63, %v235
    %v237 = vsub.f32 %v63, %v236
    %v238 = vmul.f32 %v237, 100.0
    %v239 = vmul.f32 %v238, 1.442695
    %v240 = vpow.pop %v239
    %v241 = vsub.f32 %v235, %v236
    %v242 = vmul.f32 %v241, 100.0
    %v243 = vmul.f32 %v242, 1.442695
    %v244 = vpow.pop %v243
    %v245 = vadd.f32 %v240, %v244
    %v246 = vlog2.pop %v245
    %v247 = vmul.f32 %v246, 0.6931472
    %v248 = vmul.f32 %v247, 0.01
    %v249 = vadd.f32 %v236, %v248
    %v250 = vsel %vm83, %v249, 0.0
    %251 = vmax.xlane.f32.xlu0 %v250
    %v252 = vpop.xlane.xlu0 %251
    %v253 = vrot.slane %v252, 4
    %v254 = vmax.f32 %v252, %v253
    %v255 = vrot.slane %v254, 2
    %v256 = vmax.f32 %v254, %v255
    %v257 = vrot.slane %v256, 1
    %v258 = vmax.f32 %v256, %v257
    %s259 = vtos %v258
    %v260 = vstv %s259
    %vm261 = vcmp.gt.f32.partialorder %v260, 1.0
    %v262 = vrcp.pop %v260
    %v263 = vsel %vm261, %v262, 1.0
    %v264 = vmul.f32 %v249, %v263
    %v266 = vsel %vm84, %v66, 0
    %268 = vmatprep.subr.mxu0 0.0
    %269 = vmatpush1.msra.mxu0 %v264
    %270 = vmatprep.subr.mxu0 0.0
    %271 = vmatpush1.msra.mxu0 0.0
    %272 = vmatprep.subr.mxu0 0.0
    %273 = vmatpush1.msra.mxu0 0.0
    %274 = vmatprep.subr.mxu0 0.0
    %275 = vmatpush1.msra.mxu0 0.0
    %276 = vmatprep.subr.mxu0 0.0
    %277 = vmatpush1.msra.mxu0 0.0
    %278 = vmatprep.subr.mxu0 0.0
    %279 = vmatpush1.msra.mxu0 0.0
    %280 = vmatprep.subr.mxu0 0.0
    %281 = vmatpush1.msra.mxu0 0.0
    %282 = vmatprep.subr.mxu0 0.0
    %283 = vmatpush1.msra.mxu0 0.0
    %284 = vmatprep.subr.mxu0 0.0
    %285 = vmatpush1.msra.mxu0 0.0
    %286 = vmatprep.subr.mxu0 0.0
    %287 = vmatpush1.msra.mxu0 0.0
    %288 = vmatprep.subr.mxu0 0.0
    %289 = vmatpush1.msra.mxu0 0.0
    %290 = vmatprep.subr.mxu0 0.0
    %291 = vmatpush1.msra.mxu0 0.0
    %292 = vmatprep.subr.mxu0 0.0
    %293 = vmatpush1.msra.mxu0 0.0
    %294 = vmatprep.subr.mxu0 0.0
    %295 = vmatpush1.msra.mxu0 0.0
    %296 = vmatprep.subr.mxu0 0.0
    %297 = vmatpush1.msra.mxu0 0.0
    %298 = vmatprep.subr.mxu0 0.0
    %299 = vmatpush1.msra.mxu0 0.0
    %300 = vmatprep.subr.mxu0 0.0
    %301 = vmatpush1.msra.mxu0 0.0
    %302 = vmatprep.subr.mxu0 0.0
    %303 = vmatpush1.msra.mxu0 0.0
    %304 = vmatprep.subr.mxu0 0.0
    %305 = vmatpush1.msra.mxu0 0.0
    %306 = vmatprep.subr.mxu0 0.0
    %307 = vmatpush1.msra.mxu0 0.0
    %308 = vmatprep.subr.mxu0 0.0
    %309 = vmatpush1.msra.mxu0 0.0
    %310 = vmatprep.subr.mxu0 0.0
    %311 = vmatpush1.msra.mxu0 0.0
    %312 = vmatprep.subr.mxu0 0.0
    %313 = vmatpush1.msra.mxu0 0.0
    %314 = vmatprep.subr.mxu0 0.0
    %315 = vmatpush1.msra.mxu0 0.0
    %316 = vmatprep.subr.mxu0 0.0
    %317 = vmatpush1.msra.mxu0 0.0
    %318 = vmatprep.subr.mxu0 0.0
    %319 = vmatpush1.msra.mxu0 0.0
    %320 = vmatprep.subr.mxu0 0.0
    %321 = vmatpush1.msra.mxu0 0.0
    %322 = vmatprep.subr.mxu0 0.0
    %323 = vmatpush1.msra.mxu0 0.0
    %324 = vmatprep.subr.mxu0 0.0
    %325 = vmatpush1.msra.mxu0 0.0
    %326 = vmatprep.subr.mxu0 0.0
    %327 = vmatpush1.msra.mxu0 0.0
    %328 = vmatprep.subr.mxu0 0.0
    %329 = vmatpush1.msra.mxu0 0.0
    %330 = vmatprep.subr.mxu0 0.0
    %331 = vmatpush1.msra.mxu0 0.0
    %332 = vmatprep.mubr.f32.mxu0 0.0
    %333 = vmatmul.mubr.f32.gmra.mrb[0].mxu0 %v266
    %v334 = vpop.f32.mrb[0].mxu0
    %v335 = vadd.f32 0.0, %v334
    %v336 = vpop.f32.mrb[0].mxu0
    %337 = vdwg.mxu0
    %339 = vset.pattern.permute.xlu0 0
    %340 = vperm.xlu0 %339, %v68
    %v341 = vpop.permute.xlu0 %340
    %v343 = vmul.f32 %v341, %v335
    %344 = vmax.xlane.f32.xlu0 %v343
    %v345 = vpop.xlane.xlu0 %344
    %v346 = vrot.slane %v345, 4
    %v347 = vmax.f32 %v345, %v346
    %v348 = vrot.slane %v347, 2
    %v349 = vmax.f32 %v347, %v348
    %v350 = vrot.slane %v349, 1
    %v351 = vmax.f32 %v349, %v350
    %s352 = vtos %v351
    %v353 = vstv %s352
    %v354 = vmax.f32 %v353, 0.0
    %v355 = vsub.f32 %v343, %v354
    %v356 = vmul.f32 %v355, 66.666664
    %v357 = vmul.f32 %v356, 1.442695
    %v358 = vpow.pop %v357
    %v359 = vsub.f32 0.0, %v354
    %v360 = vmul.f32 %v359, 66.666664
    %v361 = vmul.f32 %v360, 1.442695
    %v362 = vpow.pop %v361
    %v363 = vmul.f32 %v362, 0.0001
    %v365 = vsel %vm84, %v67, 0
    %367 = vmatprep.subr.mxu0 0.0
    %368 = vmatpush1.msra.mxu0 %v358
    %369 = vmatprep.subr.mxu0 0.0
    %370 = vmatpush1.msra.mxu0 0.0
    %371 = vmatprep.subr.mxu0 0.0
    %372 = vmatpush1.msra.mxu0 0.0
    %373 = vmatprep.subr.mxu0 0.0
    %374 = vmatpush1.msra.mxu0 0.0
    %375 = vmatprep.subr.mxu0 0.0
    %376 = vmatpush1.msra.mxu0 0.0
    %377 = vmatprep.subr.mxu0 0.0
    %378 = vmatpush1.msra.mxu0 0.0
    %379 = vmatprep.subr.mxu0 0.0
    %380 = vmatpush1.msra.mxu0 0.0
    %381 = vmatprep.subr.mxu0 0.0
    %382 = vmatpush1.msra.mxu0 0.0
    %383 = vmatprep.subr.mxu0 0.0
    %384 = vmatpush1.msra.mxu0 0.0
    %385 = vmatprep.subr.mxu0 0.0
    %386 = vmatpush1.msra.mxu0 0.0
    %387 = vmatprep.subr.mxu0 0.0
    %388 = vmatpush1.msra.mxu0 0.0
    %389 = vmatprep.subr.mxu0 0.0
    %390 = vmatpush1.msra.mxu0 0.0
    %391 = vmatprep.subr.mxu0 0.0
    %392 = vmatpush1.msra.mxu0 0.0
    %393 = vmatprep.subr.mxu0 0.0
    %394 = vmatpush1.msra.mxu0 0.0
    %395 = vmatprep.subr.mxu0 0.0
    %396 = vmatpush1.msra.mxu0 0.0
    %397 = vmatprep.subr.mxu0 0.0
    %398 = vmatpush1.msra.mxu0 0.0
    %399 = vmatprep.subr.mxu0 0.0
    %400 = vmatpush1.msra.mxu0 0.0
    %401 = vmatprep.subr.mxu0 0.0
    %402 = vmatpush1.msra.mxu0 0.0
    %403 = vmatprep.subr.mxu0 0.0
    %404 = vmatpush1.msra.mxu0 0.0
    %405 = vmatprep.subr.mxu0 0.0
    %406 = vmatpush1.msra.mxu0 0.0
    %407 = vmatprep.subr.mxu0 0.0
    %408 = vmatpush1.msra.mxu0 0.0
    %409 = vmatprep.subr.mxu0 0.0
    %410 = vmatpush1.msra.mxu0 0.0
    %411 = vmatprep.subr.mxu0 0.0
    %412 = vmatpush1.msra.mxu0 0.0
    %413 = vmatprep.subr.mxu0 0.0
    %414 = vmatpush1.msra.mxu0 0.0
    %415 = vmatprep.subr.mxu0 0.0
    %416 = vmatpush1.msra.mxu0 0.0
    %417 = vmatprep.subr.mxu0 0.0
    %418 = vmatpush1.msra.mxu0 0.0
    %419 = vmatprep.subr.mxu0 0.0
    %420 = vmatpush1.msra.mxu0 0.0
    %421 = vmatprep.subr.mxu0 0.0
    %422 = vmatpush1.msra.mxu0 0.0
    %423 = vmatprep.subr.mxu0 0.0
    %424 = vmatpush1.msra.mxu0 0.0
    %425 = vmatprep.subr.mxu0 0.0
    %426 = vmatpush1.msra.mxu0 0.0
    %427 = vmatprep.subr.mxu0 0.0
    %428 = vmatpush1.msra.mxu0 0.0
    %429 = vmatprep.subr.mxu0 0.0
    %430 = vmatpush1.msra.mxu0 0.0
    %431 = vmatprep.mubr.f32.mxu0 0.0
    %432 = vmatmul.mubr.f32.gmra.mrb[0].mxu0 %v365
    %v433 = vpop.f32.mrb[0].mxu0
    %v434 = vadd.f32 %v363, %v433
    %v435 = vpop.f32.mrb[0].mxu0
    %436 = vdwg.mxu0
    %v437 = vlog2.pop %v434
    %v438 = vmul.f32 %v437, 0.6931472
    %v439 = vmul.f32 %v438, 0.015
    %v440 = vadd.f32 %v354, %v439
    %v441 = vsel %vm79, %v440, 0.0
    %442 = vmax.xlane.f32.xlu0 %v441
    %v443 = vpop.xlane.xlu0 %442
    %v444 = vrot.slane %v443, 4
    %v445 = vmax.f32 %v443, %v444
    %v446 = vrot.slane %v445, 2
    %v447 = vmax.f32 %v445, %v446
    %v448 = vrot.slane %v447, 1
    %v449 = vmax.f32 %v447, %v448
    %s450 = vtos %v449
    %v451 = vstv %s450
    %vm452 = vcmp.gt.f32.partialorder %v451, 1.0
    %v453 = vrcp.pop %v451
    %v454 = vsel %vm452, %v453, 1.0
    %v455 = vmul.f32 %v440, %v454
    %v456 = vmax.f32 %v62, %v455
    %v457 = vsub.f32 %v62, %v456
    %v458 = vmul.f32 %v457, 100.0
    %v459 = vmul.f32 %v458, 1.442695
    %v460 = vpow.pop %v459
    %v461 = vsub.f32 %v455, %v456
    %v462 = vmul.f32 %v461, 100.0
    %v463 = vmul.f32 %v462, 1.442695
    %v464 = vpow.pop %v463
    %v465 = vadd.f32 %v460, %v464
    %v466 = vlog2.pop %v465
    %v467 = vmul.f32 %v466, 0.6931472
    %v468 = vmul.f32 %v467, 0.01
    %v469 = vadd.f32 %v456, %v468
    %v470 = vsel %vm79, %v469, 0.0
    %471 = vmax.xlane.f32.xlu0 %v470
    %v472 = vpop.xlane.xlu0 %471
    %v473 = vrot.slane %v472, 4
    %v474 = vmax.f32 %v472, %v473
    %v475 = vrot.slane %v474, 2
    %v476 = vmax.f32 %v474, %v475
    %v477 = vrot.slane %v476, 1
    %v478 = vmax.f32 %v476, %v477
    %s479 = vtos %v478
    %v480 = vstv %s479
    %vm481 = vcmp.gt.f32.partialorder %v480, 1.0
    %v482 = vrcp.pop %v480
    %v483 = vsel %vm481, %v482, 1.0
    %v484 = vmul.f32 %v469, %v483
    %485 = vmatprep.subr.mxu0 0.0
    %486 = vmatpush1.msra.mxu0 %v484
    %487 = vmatprep.subr.mxu0 0.0
    %488 = vmatpush1.msra.mxu0 0.0
    %489 = vmatprep.subr.mxu0 0.0
    %490 = vmatpush1.msra.mxu0 0.0
    %491 = vmatprep.subr.mxu0 0.0
    %492 = vmatpush1.msra.mxu0 0.0
    %493 = vmatprep.subr.mxu0 0.0
    %494 = vmatpush1.msra.mxu0 0.0
    %495 = vmatprep.subr.mxu0 0.0
    %496 = vmatpush1.msra.mxu0 0.0
    %497 = vmatprep.subr.mxu0 0.0
    %498 = vmatpush1.msra.mxu0 0.0
    %499 = vmatprep.subr.mxu0 0.0
    %500 = vmatpush1.msra.mxu0 0.0
    %501 = vmatprep.subr.mxu0 0.0
    %502 = vmatpush1.msra.mxu0 0.0
    %503 = vmatprep.subr.mxu0 0.0
    %504 = vmatpush1.msra.mxu0 0.0
    %505 = vmatprep.subr.mxu0 0.0
    %506 = vmatpush1.msra.mxu0 0.0
    %507 = vmatprep.subr.mxu0 0.0
    %508 = vmatpush1.msra.mxu0 0.0
    %509 = vmatprep.subr.mxu0 0.0
    %510 = vmatpush1.msra.mxu0 0.0
    %511 = vmatprep.subr.mxu0 0.0
    %512 = vmatpush1.msra.mxu0 0.0
    %513 = vmatprep.subr.mxu0 0.0
    %514 = vmatpush1.msra.mxu0 0.0
    %515 = vmatprep.subr.mxu0 0.0
    %516 = vmatpush1.msra.mxu0 0.0
    %517 = vmatprep.subr.mxu0 0.0
    %518 = vmatpush1.msra.mxu0 0.0
    %519 = vmatprep.subr.mxu0 0.0
    %520 = vmatpush1.msra.mxu0 0.0
    %521 = vmatprep.subr.mxu0 0.0
    %522 = vmatpush1.msra.mxu0 0.0
    %523 = vmatprep.subr.mxu0 0.0
    %524 = vmatpush1.msra.mxu0 0.0
    %525 = vmatprep.subr.mxu0 0.0
    %526 = vmatpush1.msra.mxu0 0.0
    %527 = vmatprep.subr.mxu0 0.0
    %528 = vmatpush1.msra.mxu0 0.0
    %529 = vmatprep.subr.mxu0 0.0
    %530 = vmatpush1.msra.mxu0 0.0
    %531 = vmatprep.subr.mxu0 0.0
    %532 = vmatpush1.msra.mxu0 0.0
    %533 = vmatprep.subr.mxu0 0.0
    %534 = vmatpush1.msra.mxu0 0.0
    %535 = vmatprep.subr.mxu0 0.0
    %536 = vmatpush1.msra.mxu0 0.0
    %537 = vmatprep.subr.mxu0 0.0
    %538 = vmatpush1.msra.mxu0 0.0
    %539 = vmatprep.subr.mxu0 0.0
    %540 = vmatpush1.msra.mxu0 0.0
    %541 = vmatprep.subr.mxu0 0.0
    %542 = vmatpush1.msra.mxu0 0.0
    %543 = vmatprep.subr.mxu0 0.0
    %544 = vmatpush1.msra.mxu0 0.0
    %545 = vmatprep.subr.mxu0 0.0
    %546 = vmatpush1.msra.mxu0 0.0
    %547 = vmatprep.subr.mxu0 0.0
    %548 = vmatpush1.msra.mxu0 0.0
    %549 = vmatprep.mubr.f32.mxu0 0.0
    %550 = vmatmul.mubr.f32.gmra.mrb[0].mxu0 %v86
    %v551 = vpop.f32.mrb[0].mxu0
    %v552 = vadd.f32 0.0, %v551
    %v553 = vpop.f32.mrb[0].mxu0
    %554 = vdwg.mxu0
    %v555 = vmax.f32 %v552, 1e-20
    %v556 = vlog2.pop %v555
    %v557 = vmul.f32 %v556, 0.6931472
    %558 = vmatprep.subr.mxu0 0.0
    %559 = vmatpush1.msra.mxu0 %v557
    %560 = vmatprep.subr.mxu0 0.0
    %561 = vmatpush1.msra.mxu0 0.0
    %562 = vmatprep.subr.mxu0 0.0
    %563 = vmatpush1.msra.mxu0 0.0
    %564 = vmatprep.subr.mxu0 0.0
    %565 = vmatpush1.msra.mxu0 0.0
    %566 = vmatprep.subr.mxu0 0.0
    %567 = vmatpush1.msra.mxu0 0.0
    %568 = vmatprep.subr.mxu0 0.0
    %569 = vmatpush1.msra.mxu0 0.0
    %570 = vmatprep.subr.mxu0 0.0
    %571 = vmatpush1.msra.mxu0 0.0
    %572 = vmatprep.subr.mxu0 0.0
    %573 = vmatpush1.msra.mxu0 0.0
    %574 = vmatprep.subr.mxu0 0.0
    %575 = vmatpush1.msra.mxu0 0.0
    %576 = vmatprep.subr.mxu0 0.0
    %577 = vmatpush1.msra.mxu0 0.0
    %578 = vmatprep.subr.mxu0 0.0
    %579 = vmatpush1.msra.mxu0 0.0
    %580 = vmatprep.subr.mxu0 0.0
    %581 = vmatpush1.msra.mxu0 0.0
    %582 = vmatprep.subr.mxu0 0.0
    %583 = vmatpush1.msra.mxu0 0.0
    %584 = vmatprep.subr.mxu0 0.0
    %585 = vmatpush1.msra.mxu0 0.0
    %586 = vmatprep.subr.mxu0 0.0
    %587 = vmatpush1.msra.mxu0 0.0
    %588 = vmatprep.subr.mxu0 0.0
    %589 = vmatpush1.msra.mxu0 0.0
    %590 = vmatprep.subr.mxu0 0.0
    %591 = vmatpush1.msra.mxu0 0.0
    %592 = vmatprep.subr.mxu0 0.0
    %593 = vmatpush1.msra.mxu0 0.0
    %594 = vmatprep.subr.mxu0 0.0
    %595 = vmatpush1.msra.mxu0 0.0
    %596 = vmatprep.subr.mxu0 0.0
    %597 = vmatpush1.msra.mxu0 0.0
    %598 = vmatprep.subr.mxu0 0.0
    %599 = vmatpush1.msra.mxu0 0.0
    %600 = vmatprep.subr.mxu0 0.0
    %601 = vmatpush1.msra.mxu0 0.0
    %602 = vmatprep.subr.mxu0 0.0
    %603 = vmatpush1.msra.mxu0 0.0
    %604 = vmatprep.subr.mxu0 0.0
    %605 = vmatpush1.msra.mxu0 0.0
    %606 = vmatprep.subr.mxu0 0.0
    %607 = vmatpush1.msra.mxu0 0.0
    %608 = vmatprep.subr.mxu0 0.0
    %609 = vmatpush1.msra.mxu0 0.0
    %610 = vmatprep.subr.mxu0 0.0
    %611 = vmatpush1.msra.mxu0 0.0
    %612 = vmatprep.subr.mxu0 0.0
    %613 = vmatpush1.msra.mxu0 0.0
    %614 = vmatprep.subr.mxu0 0.0
    %615 = vmatpush1.msra.mxu0 0.0
    %616 = vmatprep.subr.mxu0 0.0
    %617 = vmatpush1.msra.mxu0 0.0
    %618 = vmatprep.subr.mxu0 0.0
    %619 = vmatpush1.msra.mxu0 0.0
    %620 = vmatprep.subr.mxu0 0.0
    %621 = vmatpush1.msra.mxu0 0.0
    %622 = vmatprep.mubr.f32.mxu0 0.0
    %623 = vmatmul.mubr.f32.gmra.mrb[0].mxu0 %v162
    %v624 = vpop.f32.mrb[0].mxu0
    %v625 = vadd.f32 0.0, %v624
    %v626 = vpop.f32.mrb[0].mxu0
    %627 = vdwg.mxu0
    %v628 = vmul.f32 %v625, 1.442695
    %v629 = vpow.pop %v628
    %v630 = vmax.f32 %v264, %v629
    %v631 = vsub.f32 %v264, %v630
    %v632 = vmul.f32 %v631, 100.0
    %v633 = vmul.f32 %v632, 1.442695
    %v634 = vpow.pop %v633
    %v635 = vsub.f32 %v629, %v630
    %v636 = vmul.f32 %v635, 100.0
    %v637 = vmul.f32 %v636, 1.442695
    %v638 = vpow.pop %v637
    %v639 = vadd.f32 %v634, %v638
    %v640 = vlog2.pop %v639
    %v641 = vmul.f32 %v640, 0.6931472
    %v642 = vmul.f32 %v641, 0.01
    %v643 = vadd.f32 %v630, %v642
    %v644 = vsel %vm83, %v643, 0.0
    %645 = vmax.xlane.f32.xlu0 %v644
    %v646 = vpop.xlane.xlu0 %645
    %v647 = vrot.slane %v646, 4
    %v648 = vmax.f32 %v646, %v647
    %v649 = vrot.slane %v648, 2
    %v650 = vmax.f32 %v648, %v649
    %v651 = vrot.slane %v650, 1
    %v652 = vmax.f32 %v650, %v651
    %s653 = vtos %v652
    %v654 = vstv %s653
    %vm655 = vcmp.gt.f32.partialorder %v654, 1.0
    %v656 = vrcp.pop %v654
    %v657 = vsel %vm655, %v656, 1.0
    %v658 = vmul.f32 %v643, %v657
    %659 = vmatprep.subr.mxu0 0.0
    %660 = vmatpush1.msra.mxu0 %v658
    %661 = vmatprep.subr.mxu0 0.0
    %662 = vmatpush1.msra.mxu0 0.0
    %663 = vmatprep.subr.mxu0 0.0
    %664 = vmatpush1.msra.mxu0 0.0
    %665 = vmatprep.subr.mxu0 0.0
    %666 = vmatpush1.msra.mxu0 0.0
    %667 = vmatprep.subr.mxu0 0.0
    %668 = vmatpush1.msra.mxu0 0.0
    %669 = vmatprep.subr.mxu0 0.0
    %670 = vmatpush1.msra.mxu0 0.0
    %671 = vmatprep.subr.mxu0 0.0
    %672 = vmatpush1.msra.mxu0 0.0
    %673 = vmatprep.subr.mxu0 0.0
    %674 = vmatpush1.msra.mxu0 0.0
    %675 = vmatprep.subr.mxu0 0.0
    %676 = vmatpush1.msra.mxu0 0.0
    %677 = vmatprep.subr.mxu0 0.0
    %678 = vmatpush1.msra.mxu0 0.0
    %679 = vmatprep.subr.mxu0 0.0
    %680 = vmatpush1.msra.mxu0 0.0
    %681 = vmatprep.subr.mxu0 0.0
    %682 = vmatpush1.msra.mxu0 0.0
    %683 = vmatprep.subr.mxu0 0.0
    %684 = vmatpush1.msra.mxu0 0.0
    %685 = vmatprep.subr.mxu0 0.0
    %686 = vmatpush1.msra.mxu0 0.0
    %687 = vmatprep.subr.mxu0 0.0
    %688 = vmatpush1.msra.mxu0 0.0
    %689 = vmatprep.subr.mxu0 0.0
    %690 = vmatpush1.msra.mxu0 0.0
    %691 = vmatprep.subr.mxu0 0.0
    %692 = vmatpush1.msra.mxu0 0.0
    %693 = vmatprep.subr.mxu0 0.0
    %694 = vmatpush1.msra.mxu0 0.0
    %695 = vmatprep.subr.mxu0 0.0
    %696 = vmatpush1.msra.mxu0 0.0
    %697 = vmatprep.subr.mxu0 0.0
    %698 = vmatpush1.msra.mxu0 0.0
    %699 = vmatprep.subr.mxu0 0.0
    %700 = vmatpush1.msra.mxu0 0.0
    %701 = vmatprep.subr.mxu0 0.0
    %702 = vmatpush1.msra.mxu0 0.0
    %703 = vmatprep.subr.mxu0 0.0
    %704 = vmatpush1.msra.mxu0 0.0
    %705 = vmatprep.subr.mxu0 0.0
    %706 = vmatpush1.msra.mxu0 0.0
    %707 = vmatprep.subr.mxu0 0.0
    %708 = vmatpush1.msra.mxu0 0.0
    %709 = vmatprep.subr.mxu0 0.0
    %710 = vmatpush1.msra.mxu0 0.0
    %711 = vmatprep.subr.mxu0 0.0
    %712 = vmatpush1.msra.mxu0 0.0
    %713 = vmatprep.subr.mxu0 0.0
    %714 = vmatpush1.msra.mxu0 0.0
    %715 = vmatprep.subr.mxu0 0.0
    %716 = vmatpush1.msra.mxu0 0.0
    %717 = vmatprep.subr.mxu0 0.0
    %718 = vmatpush1.msra.mxu0 0.0
    %719 = vmatprep.subr.mxu0 0.0
    %720 = vmatpush1.msra.mxu0 0.0
    %721 = vmatprep.subr.mxu0 0.0
    %722 = vmatpush1.msra.mxu0 0.0
    %723 = vmatprep.mubr.f32.mxu0 0.0
    %724 = vmatmul.mubr.f32.gmra.mrb[0].mxu0 %v266
    %v725 = vpop.f32.mrb[0].mxu0
    %v726 = vadd.f32 0.0, %v725
    %v727 = vpop.f32.mrb[0].mxu0
    %728 = vdwg.mxu0
    %v729 = vmul.f32 %v341, %v726
    %730 = vmax.xlane.f32.xlu0 %v729
    %v731 = vpop.xlane.xlu0 %730
    %v732 = vrot.slane %v731, 4
    %v733 = vmax.f32 %v731, %v732
    %v734 = vrot.slane %v733, 2
    %v735 = vmax.f32 %v733, %v734
    %v736 = vrot.slane %v735, 1
    %v737 = vmax.f32 %v735, %v736
    %s738 = vtos %v737
    %v739 = vstv %s738
    %v740 = vmax.f32 %v739, 0.0
    %v741 = vsub.f32 %v729, %v740
    %v742 = vmul.f32 %v741, 66.666664
    %v743 = vmul.f32 %v742, 1.442695
    %v744 = vpow.pop %v743
    %v745 = vsub.f32 0.0, %v740
    %v746 = vmul.f32 %v745, 66.666664
    %v747 = vmul.f32 %v746, 1.442695
    %v748 = vpow.pop %v747
    %v749 = vmul.f32 %v748, 0.0001
    %750 = vmatprep.subr.mxu0 0.0
    %751 = vmatpush1.msra.mxu0 %v744
    %752 = vmatprep.subr.mxu0 0.0
    %753 = vmatpush1.msra.mxu0 0.0
    %754 = vmatprep.subr.mxu0 0.0
    %755 = vmatpush1.msra.mxu0 0.0
    %756 = vmatprep.subr.mxu0 0.0
    %757 = vmatpush1.msra.mxu0 0.0
    %758 = vmatprep.subr.mxu0 0.0
    %759 = vmatpush1.msra.mxu0 0.0
    %760 = vmatprep.subr.mxu0 0.0
    %761 = vmatpush1.msra.mxu0 0.0
    %762 = vmatprep.subr.mxu0 0.0
    %763 = vmatpush1.msra.mxu0 0.0
    %764 = vmatprep.subr.mxu0 0.0
    %765 = vmatpush1.msra.mxu0 0.0
    %766 = vmatprep.subr.mxu0 0.0
    %767 = vmatpush1.msra.mxu0 0.0
    %768 = vmatprep.subr.mxu0 0.0
    %769 = vmatpush1.msra.mxu0 0.0
    %770 = vmatprep.subr.mxu0 0.0
    %771 = vmatpush1.msra.mxu0 0.0
    %772 = vmatprep.subr.mxu0 0.0
    %773 = vmatpush1.msra.mxu0 0.0
    %774 = vmatprep.subr.mxu0 0.0
    %775 = vmatpush1.msra.mxu0 0.0
    %776 = vmatprep.subr.mxu0 0.0
    %777 = vmatpush1.msra.mxu0 0.0
    %778 = vmatprep.subr.mxu0 0.0
    %779 = vmatpush1.msra.mxu0 0.0
    %780 = vmatprep.subr.mxu0 0.0
    %781 = vmatpush1.msra.mxu0 0.0
    %782 = vmatprep.subr.mxu0 0.0
    %783 = vmatpush1.msra.mxu0 0.0
    %784 = vmatprep.subr.mxu0 0.0
    %785 = vmatpush1.msra.mxu0 0.0
    %786 = vmatprep.subr.mxu0 0.0
    %787 = vmatpush1.msra.mxu0 0.0
    %788 = vmatprep.subr.mxu0 0.0
    %789 = vmatpush1.msra.mxu0 0.0
    %790 = vmatprep.subr.mxu0 0.0
    %791 = vmatpush1.msra.mxu0 0.0
    %792 = vmatprep.subr.mxu0 0.0
    %793 = vmatpush1.msra.mxu0 0.0
    %794 = vmatprep.subr.mxu0 0.0
    %795 = vmatpush1.msra.mxu0 0.0
    %796 = vmatprep.subr.mxu0 0.0
    %797 = vmatpush1.msra.mxu0 0.0
    %798 = vmatprep.subr.mxu0 0.0
    %799 = vmatpush1.msra.mxu0 0.0
    %800 = vmatprep.subr.mxu0 0.0
    %801 = vmatpush1.msra.mxu0 0.0
    %802 = vmatprep.subr.mxu0 0.0
    %803 = vmatpush1.msra.mxu0 0.0
    %804 = vmatprep.subr.mxu0 0.0
    %805 = vmatpush1.msra.mxu0 0.0
    %806 = vmatprep.subr.mxu0 0.0
    %807 = vmatpush1.msra.mxu0 0.0
    %808 = vmatprep.subr.mxu0 0.0
    %809 = vmatpush1.msra.mxu0 0.0
    %810 = vmatprep.subr.mxu0 0.0
    %811 = vmatpush1.msra.mxu0 0.0
    %812 = vmatprep.subr.mxu0 0.0
    %813 = vmatpush1.msra.mxu0 0.0
    %814 = vmatprep.mubr.f32.mxu0 0.0
    %815 = vmatmul.mubr.f32.gmra.mrb[0].mxu0 %v365
    %v816 = vpop.f32.mrb[0].mxu0
    %v817 = vadd.f32 %v749, %v816
    %v818 = vpop.f32.mrb[0].mxu0
    %819 = vdwg.mxu0
    %v820 = vlog2.pop %v817
    %v821 = vmul.f32 %v820, 0.6931472
    %v822 = vmul.f32 %v821, 0.015
    %v823 = vadd.f32 %v740, %v822
    %v824 = vsel %vm79, %v823, 0.0
    %825 = vmax.xlane.f32.xlu0 %v824
    %v826 = vpop.xlane.xlu0 %825
    %v827 = vrot.slane %v826, 4
    %v828 = vmax.f32 %v826, %v827
    %v829 = vrot.slane %v828, 2
    %v830 = vmax.f32 %v828, %v829
    %v831 = vrot.slane %v830, 1
    %v832 = vmax.f32 %v830, %v831
    %s833 = vtos %v832
    %v834 = vstv %s833
    %vm835 = vcmp.gt.f32.partialorder %v834, 1.0
    %v836 = vrcp.pop %v834
    %v837 = vsel %vm835, %v836, 1.0
    %v838 = vmul.f32 %v823, %v837
    %v839 = vmax.f32 %v484, %v838
    %v840 = vsub.f32 %v484, %v839
    %v841 = vmul.f32 %v840, 100.0
    %v842 = vmul.f32 %v841, 1.442695
    %v843 = vpow.pop %v842
    %v844 = vsub.f32 %v838, %v839
    %v845 = vmul.f32 %v844, 100.0
    %v846 = vmul.f32 %v845, 1.442695
    %v847 = vpow.pop %v846
    %v848 = vadd.f32 %v843, %v847
    %v849 = vlog2.pop %v848
    %v850 = vmul.f32 %v849, 0.6931472
    %v851 = vmul.f32 %v850, 0.01
    %v852 = vadd.f32 %v839, %v851
    %v853 = vsel %vm79, %v852, 0.0
    %854 = vmax.xlane.f32.xlu0 %v853
    %v855 = vpop.xlane.xlu0 %854
    %v856 = vrot.slane %v855, 4
    %v857 = vmax.f32 %v855, %v856
    %v858 = vrot.slane %v857, 2
    %v859 = vmax.f32 %v857, %v858
    %v860 = vrot.slane %v859, 1
    %v861 = vmax.f32 %v859, %v860
    %s862 = vtos %v861
    %v863 = vstv %s862
    %vm864 = vcmp.gt.f32.partialorder %v863, 1.0
    %v865 = vrcp.pop %v863
    %v866 = vsel %vm864, %v865, 1.0
    %v867 = vmul.f32 %v852, %v866
    %868 = vmatprep.subr.mxu0 0.0
    %869 = vmatpush1.msra.mxu0 %v867
    %870 = vmatprep.subr.mxu0 0.0
    %871 = vmatpush1.msra.mxu0 0.0
    %872 = vmatprep.subr.mxu0 0.0
    %873 = vmatpush1.msra.mxu0 0.0
    %874 = vmatprep.subr.mxu0 0.0
    %875 = vmatpush1.msra.mxu0 0.0
    %876 = vmatprep.subr.mxu0 0.0
    %877 = vmatpush1.msra.mxu0 0.0
    %878 = vmatprep.subr.mxu0 0.0
    %879 = vmatpush1.msra.mxu0 0.0
    %880 = vmatprep.subr.mxu0 0.0
    %881 = vmatpush1.msra.mxu0 0.0
    %882 = vmatprep.subr.mxu0 0.0
    %883 = vmatpush1.msra.mxu0 0.0
    %884 = vmatprep.subr.mxu0 0.0
    %885 = vmatpush1.msra.mxu0 0.0
    %886 = vmatprep.subr.mxu0 0.0
    %887 = vmatpush1.msra.mxu0 0.0
    %888 = vmatprep.subr.mxu0 0.0
    %889 = vmatpush1.msra.mxu0 0.0
    %890 = vmatprep.subr.mxu0 0.0
    %891 = vmatpush1.msra.mxu0 0.0
    %892 = vmatprep.subr.mxu0 0.0
    %893 = vmatpush1.msra.mxu0 0.0
    %894 = vmatprep.subr.mxu0 0.0
    %895 = vmatpush1.msra.mxu0 0.0
    %896 = vmatprep.subr.mxu0 0.0
    %897 = vmatpush1.msra.mxu0 0.0
    %898 = vmatprep.subr.mxu0 0.0
    %899 = vmatpush1.msra.mxu0 0.0
    %900 = vmatprep.subr.mxu0 0.0
    %901 = vmatpush1.msra.mxu0 0.0
    %902 = vmatprep.subr.mxu0 0.0
    %903 = vmatpush1.msra.mxu0 0.0
    %904 = vmatprep.subr.mxu0 0.0
    %905 = vmatpush1.msra.mxu0 0.0
    %906 = vmatprep.subr.mxu0 0.0
    %907 = vmatpush1.msra.mxu0 0.0
    %908 = vmatprep.subr.mxu0 0.0
    %909 = vmatpush1.msra.mxu0 0.0
    %910 = vmatprep.subr.mxu0 0.0
    %911 = vmatpush1.msra.mxu0 0.0
    %912 = vmatprep.subr.mxu0 0.0
    %913 = vmatpush1.msra.mxu0 0.0
    %914 = vmatprep.subr.mxu0 0.0
    %915 = vmatpush1.msra.mxu0 0.0
    %916 = vmatprep.subr.mxu0 0.0
    %917 = vmatpush1.msra.mxu0 0.0
    %918 = vmatprep.subr.mxu0 0.0
    %919 = vmatpush1.msra.mxu0 0.0
    %920 = vmatprep.subr.mxu0 0.0
    %921 = vmatpush1.msra.mxu0 0.0
    %922 = vmatprep.subr.mxu0 0.0
    %923 = vmatpush1.msra.mxu0 0.0
    %924 = vmatprep.subr.mxu0 0.0
    %925 = vmatpush1.msra.mxu0 0.0
    %926 = vmatprep.subr.mxu0 0.0
    %927 = vmatpush1.msra.mxu0 0.0
    %928 = vmatprep.subr.mxu0 0.0
    %929 = vmatpush1.msra.mxu0 0.0
    %930 = vmatprep.subr.mxu0 0.0
    %931 = vmatpush1.msra.mxu0 0.0
    %932 = vmatprep.mubr.f32.mxu0 0.0
    %933 = vmatmul.mubr.f32.gmra.mrb[0].mxu0 %v86
    %v934 = vpop.f32.mrb[0].mxu0
    %v935 = vadd.f32 0.0, %v934
    %v936 = vpop.f32.mrb[0].mxu0
    %937 = vdwg.mxu0
    %v938 = vmax.f32 %v935, 1e-20
    %v939 = vlog2.pop %v938
    %v940 = vmul.f32 %v939, 0.6931472
    %941 = vmatprep.subr.mxu0 0.0
    %942 = vmatpush1.msra.mxu0 %v940
    %943 = vmatprep.subr.mxu0 0.0
    %944 = vmatpush1.msra.mxu0 0.0
    %945 = vmatprep.subr.mxu0 0.0
    %946 = vmatpush1.msra.mxu0 0.0
    %947 = vmatprep.subr.mxu0 0.0
    %948 = vmatpush1.msra.mxu0 0.0
    %949 = vmatprep.subr.mxu0 0.0
    %950 = vmatpush1.msra.mxu0 0.0
    %951 = vmatprep.subr.mxu0 0.0
    %952 = vmatpush1.msra.mxu0 0.0
    %953 = vmatprep.subr.mxu0 0.0
    %954 = vmatpush1.msra.mxu0 0.0
    %955 = vmatprep.subr.mxu0 0.0
    %956 = vmatpush1.msra.mxu0 0.0
    %957 = vmatprep.subr.mxu0 0.0
    %958 = vmatpush1.msra.mxu0 0.0
    %959 = vmatprep.subr.mxu0 0.0
    %960 = vmatpush1.msra.mxu0 0.0
    %961 = vmatprep.subr.mxu0 0.0
    %962 = vmatpush1.msra.mxu0 0.0
    %963 = vmatprep.subr.mxu0 0.0
    %964 = vmatpush1.msra.mxu0 0.0
    %965 = vmatprep.subr.mxu0 0.0
    %966 = vmatpush1.msra.mxu0 0.0
    %967 = vmatprep.subr.mxu0 0.0
    %968 = vmatpush1.msra.mxu0 0.0
    %969 = vmatprep.subr.mxu0 0.0
    %970 = vmatpush1.msra.mxu0 0.0
    %971 = vmatprep.subr.mxu0 0.0
    %972 = vmatpush1.msra.mxu0 0.0
    %973 = vmatprep.subr.mxu0 0.0
    %974 = vmatpush1.msra.mxu0 0.0
    %975 = vmatprep.subr.mxu0 0.0
    %976 = vmatpush1.msra.mxu0 0.0
    %977 = vmatprep.subr.mxu0 0.0
    %978 = vmatpush1.msra.mxu0 0.0
    %979 = vmatprep.subr.mxu0 0.0
    %980 = vmatpush1.msra.mxu0 0.0
    %981 = vmatprep.subr.mxu0 0.0
    %982 = vmatpush1.msra.mxu0 0.0
    %983 = vmatprep.subr.mxu0 0.0
    %984 = vmatpush1.msra.mxu0 0.0
    %985 = vmatprep.subr.mxu0 0.0
    %986 = vmatpush1.msra.mxu0 0.0
    %987 = vmatprep.subr.mxu0 0.0
    %988 = vmatpush1.msra.mxu0 0.0
    %989 = vmatprep.subr.mxu0 0.0
    %990 = vmatpush1.msra.mxu0 0.0
    %991 = vmatprep.subr.mxu0 0.0
    %992 = vmatpush1.msra.mxu0 0.0
    %993 = vmatprep.subr.mxu0 0.0
    %994 = vmatpush1.msra.mxu0 0.0
    %995 = vmatprep.subr.mxu0 0.0
    %996 = vmatpush1.msra.mxu0 0.0
    %997 = vmatprep.subr.mxu0 0.0
    %998 = vmatpush1.msra.mxu0 0.0
    %999 = vmatprep.subr.mxu0 0.0
    %1000 = vmatpush1.msra.mxu0 0.0
    %1001 = vmatprep.subr.mxu0 0.0
    %1002 = vmatpush1.msra.mxu0 0.0
    %1003 = vmatprep.subr.mxu0 0.0
    %1004 = vmatpush1.msra.mxu0 0.0
    %1005 = vmatprep.mubr.f32.mxu0 0.0
    %1006 = vmatmul.mubr.f32.gmra.mrb[0].mxu0 %v162
    %v1007 = vpop.f32.mrb[0].mxu0
    %v1008 = vadd.f32 0.0, %v1007
    %v1009 = vpop.f32.mrb[0].mxu0
    %1010 = vdwg.mxu0
    %v1011 = vmul.f32 %v1008, 1.442695
    %v1012 = vpow.pop %v1011
    %v1013 = vmax.f32 %v658, %v1012
    %v1014 = vsub.f32 %v658, %v1013
    %v1015 = vmul.f32 %v1014, 100.0
    %v1016 = vmul.f32 %v1015, 1.442695
    %v1017 = vpow.pop %v1016
    %v1018 = vsub.f32 %v1012, %v1013
    %v1019 = vmul.f32 %v1018, 100.0
    %v1020 = vmul.f32 %v1019, 1.442695
    %v1021 = vpow.pop %v1020
    %v1022 = vadd.f32 %v1017, %v1021
    %v1023 = vlog2.pop %v1022
    %v1024 = vmul.f32 %v1023, 0.6931472
    %v1025 = vmul.f32 %v1024, 0.01
    %v1026 = vadd.f32 %v1013, %v1025
    %v1027 = vsel %vm83, %v1026, 0.0
    %1028 = vmax.xlane.f32.xlu0 %v1027
    %v1029 = vpop.xlane.xlu0 %1028
    %v1030 = vrot.slane %v1029, 4
    %v1031 = vmax.f32 %v1029, %v1030
    %v1032 = vrot.slane %v1031, 2
    %v1033 = vmax.f32 %v1031, %v1032
    %v1034 = vrot.slane %v1033, 1
    %v1035 = vmax.f32 %v1033, %v1034
    %s1036 = vtos %v1035
    %v1037 = vstv %s1036
    %vm1038 = vcmp.gt.f32.partialorder %v1037, 1.0
    %v1039 = vrcp.pop %v1037
    %v1040 = vsel %vm1038, %v1039, 1.0
    %v1041 = vmul.f32 %v1026, %v1040
    %1042 = vmatprep.subr.mxu0 0.0
    %1043 = vmatpush1.msra.mxu0 %v1041
    %1044 = vmatprep.subr.mxu0 0.0
    %1045 = vmatpush1.msra.mxu0 0.0
    %1046 = vmatprep.subr.mxu0 0.0
    %1047 = vmatpush1.msra.mxu0 0.0
    %1048 = vmatprep.subr.mxu0 0.0
    %1049 = vmatpush1.msra.mxu0 0.0
    %1050 = vmatprep.subr.mxu0 0.0
    %1051 = vmatpush1.msra.mxu0 0.0
    %1052 = vmatprep.subr.mxu0 0.0
    %1053 = vmatpush1.msra.mxu0 0.0
    %1054 = vmatprep.subr.mxu0 0.0
    %1055 = vmatpush1.msra.mxu0 0.0
    %1056 = vmatprep.subr.mxu0 0.0
    %1057 = vmatpush1.msra.mxu0 0.0
    %1058 = vmatprep.subr.mxu0 0.0
    %1059 = vmatpush1.msra.mxu0 0.0
    %1060 = vmatprep.subr.mxu0 0.0
    %1061 = vmatpush1.msra.mxu0 0.0
    %1062 = vmatprep.subr.mxu0 0.0
    %1063 = vmatpush1.msra.mxu0 0.0
    %1064 = vmatprep.subr.mxu0 0.0
    %1065 = vmatpush1.msra.mxu0 0.0
    %1066 = vmatprep.subr.mxu0 0.0
    %1067 = vmatpush1.msra.mxu0 0.0
    %1068 = vmatprep.subr.mxu0 0.0
    %1069 = vmatpush1.msra.mxu0 0.0
    %1070 = vmatprep.subr.mxu0 0.0
    %1071 = vmatpush1.msra.mxu0 0.0
    %1072 = vmatprep.subr.mxu0 0.0
    %1073 = vmatpush1.msra.mxu0 0.0
    %1074 = vmatprep.subr.mxu0 0.0
    %1075 = vmatpush1.msra.mxu0 0.0
    %1076 = vmatprep.subr.mxu0 0.0
    %1077 = vmatpush1.msra.mxu0 0.0
    %1078 = vmatprep.subr.mxu0 0.0
    %1079 = vmatpush1.msra.mxu0 0.0
    %1080 = vmatprep.subr.mxu0 0.0
    %1081 = vmatpush1.msra.mxu0 0.0
    %1082 = vmatprep.subr.mxu0 0.0
    %1083 = vmatpush1.msra.mxu0 0.0
    %1084 = vmatprep.subr.mxu0 0.0
    %1085 = vmatpush1.msra.mxu0 0.0
    %1086 = vmatprep.subr.mxu0 0.0
    %1087 = vmatpush1.msra.mxu0 0.0
    %1088 = vmatprep.subr.mxu0 0.0
    %1089 = vmatpush1.msra.mxu0 0.0
    %1090 = vmatprep.subr.mxu0 0.0
    %1091 = vmatpush1.msra.mxu0 0.0
    %1092 = vmatprep.subr.mxu0 0.0
    %1093 = vmatpush1.msra.mxu0 0.0
    %1094 = vmatprep.subr.mxu0 0.0
    %1095 = vmatpush1.msra.mxu0 0.0
    %1096 = vmatprep.subr.mxu0 0.0
    %1097 = vmatpush1.msra.mxu0 0.0
    %1098 = vmatprep.subr.mxu0 0.0
    %1099 = vmatpush1.msra.mxu0 0.0
    %1100 = vmatprep.subr.mxu0 0.0
    %1101 = vmatpush1.msra.mxu0 0.0
    %1102 = vmatprep.subr.mxu0 0.0
    %1103 = vmatpush1.msra.mxu0 0.0
    %1104 = vmatprep.subr.mxu0 0.0
    %1105 = vmatpush1.msra.mxu0 0.0
    %1106 = vmatprep.mubr.f32.mxu0 0.0
    %1107 = vmatmul.mubr.f32.gmra.mrb[0].mxu0 %v266
    %v1108 = vpop.f32.mrb[0].mxu0
    %v1109 = vadd.f32 0.0, %v1108
    %v1110 = vpop.f32.mrb[0].mxu0
    %1111 = vdwg.mxu0
    %v1112 = vmul.f32 %v341, %v1109
    %1113 = vmax.xlane.f32.xlu0 %v1112
    %v1114 = vpop.xlane.xlu0 %1113
    %v1115 = vrot.slane %v1114, 4
    %v1116 = vmax.f32 %v1114, %v1115
    %v1117 = vrot.slane %v1116, 2
    %v1118 = vmax.f32 %v1116, %v1117
    %v1119 = vrot.slane %v1118, 1
    %v1120 = vmax.f32 %v1118, %v1119
    %s1121 = vtos %v1120
    %v1122 = vstv %s1121
    %v1123 = vmax.f32 %v1122, 0.0
    %v1124 = vsub.f32 %v1112, %v1123
    %v1125 = vmul.f32 %v1124, 66.666664
    %v1126 = vmul.f32 %v1125, 1.442695
    %v1127 = vpow.pop %v1126
    %v1128 = vsub.f32 0.0, %v1123
    %v1129 = vmul.f32 %v1128, 66.666664
    %v1130 = vmul.f32 %v1129, 1.442695
    %v1131 = vpow.pop %v1130
    %v1132 = vmul.f32 %v1131, 0.0001
    %1133 = vmatprep.subr.mxu0 0.0
    %1134 = vmatpush1.msra.mxu0 %v1127
    %1135 = vmatprep.subr.mxu0 0.0
    %1136 = vmatpush1.msra.mxu0 0.0
    %1137 = vmatprep.subr.mxu0 0.0
    %1138 = vmatpush1.msra.mxu0 0.0
    %1139 = vmatprep.subr.mxu0 0.0
    %1140 = vmatpush1.msra.mxu0 0.0
    %1141 = vmatprep.subr.mxu0 0.0
    %1142 = vmatpush1.msra.mxu0 0.0
    %1143 = vmatprep.subr.mxu0 0.0
    %1144 = vmatpush1.msra.mxu0 0.0
    %1145 = vmatprep.subr.mxu0 0.0
    %1146 = vmatpush1.msra.mxu0 0.0
    %1147 = vmatprep.subr.mxu0 0.0
    %1148 = vmatpush1.msra.mxu0 0.0
    %1149 = vmatprep.subr.mxu0 0.0
    %1150 = vmatpush1.msra.mxu0 0.0
    %1151 = vmatprep.subr.mxu0 0.0
    %1152 = vmatpush1.msra.mxu0 0.0
    %1153 = vmatprep.subr.mxu0 0.0
    %1154 = vmatpush1.msra.mxu0 0.0
    %1155 = vmatprep.subr.mxu0 0.0
    %1156 = vmatpush1.msra.mxu0 0.0
    %1157 = vmatprep.subr.mxu0 0.0
    %1158 = vmatpush1.msra.mxu0 0.0
    %1159 = vmatprep.subr.mxu0 0.0
    %1160 = vmatpush1.msra.mxu0 0.0
    %1161 = vmatprep.subr.mxu0 0.0
    %1162 = vmatpush1.msra.mxu0 0.0
    %1163 = vmatprep.subr.mxu0 0.0
    %1164 = vmatpush1.msra.mxu0 0.0
    %1165 = vmatprep.subr.mxu0 0.0
    %1166 = vmatpush1.msra.mxu0 0.0
    %1167 = vmatprep.subr.mxu0 0.0
    %1168 = vmatpush1.msra.mxu0 0.0
    %1169 = vmatprep.subr.mxu0 0.0
    %1170 = vmatpush1.msra.mxu0 0.0
    %1171 = vmatprep.subr.mxu0 0.0
    %1172 = vmatpush1.msra.mxu0 0.0
    %1173 = vmatprep.subr.mxu0 0.0
    %1174 = vmatpush1.msra.mxu0 0.0
    %1175 = vmatprep.subr.mxu0 0.0
    %1176 = vmatpush1.msra.mxu0 0.0
    %1177 = vmatprep.subr.mxu0 0.0
    %1178 = vmatpush1.msra.mxu0 0.0
    %1179 = vmatprep.subr.mxu0 0.0
    %1180 = vmatpush1.msra.mxu0 0.0
    %1181 = vmatprep.subr.mxu0 0.0
    %1182 = vmatpush1.msra.mxu0 0.0
    %1183 = vmatprep.subr.mxu0 0.0
    %1184 = vmatpush1.msra.mxu0 0.0
    %1185 = vmatprep.subr.mxu0 0.0
    %1186 = vmatpush1.msra.mxu0 0.0
    %1187 = vmatprep.subr.mxu0 0.0
    %1188 = vmatpush1.msra.mxu0 0.0
    %1189 = vmatprep.subr.mxu0 0.0
    %1190 = vmatpush1.msra.mxu0 0.0
    %1191 = vmatprep.subr.mxu0 0.0
    %1192 = vmatpush1.msra.mxu0 0.0
    %1193 = vmatprep.subr.mxu0 0.0
    %1194 = vmatpush1.msra.mxu0 0.0
    %1195 = vmatprep.subr.mxu0 0.0
    %1196 = vmatpush1.msra.mxu0 0.0
    %1197 = vmatprep.mubr.f32.mxu0 0.0
    %1198 = vmatmul.mubr.f32.gmra.mrb[0].mxu0 %v365
    %v1199 = vpop.f32.mrb[0].mxu0
    %v1200 = vadd.f32 %v1132, %v1199
    %v1201 = vpop.f32.mrb[0].mxu0
    %1202 = vdwg.mxu0
    %v1203 = vlog2.pop %v1200
    %v1204 = vmul.f32 %v1203, 0.6931472
    %v1205 = vmul.f32 %v1204, 0.015
    %v1206 = vadd.f32 %v1123, %v1205
    %v1207 = vsel %vm79, %v1206, 0.0
    %1208 = vmax.xlane.f32.xlu0 %v1207
    %v1209 = vpop.xlane.xlu0 %1208
    %v1210 = vrot.slane %v1209, 4
    %v1211 = vmax.f32 %v1209, %v1210
    %v1212 = vrot.slane %v1211, 2
    %v1213 = vmax.f32 %v1211, %v1212
    %v1214 = vrot.slane %v1213, 1
    %v1215 = vmax.f32 %v1213, %v1214
    %s1216 = vtos %v1215
    %v1217 = vstv %s1216
    %vm1218 = vcmp.gt.f32.partialorder %v1217, 1.0
    %v1219 = vrcp.pop %v1217
    %v1220 = vsel %vm1218, %v1219, 1.0
    %v1221 = vmul.f32 %v1206, %v1220
    %v1222 = vmax.f32 %v867, %v1221
    %v1223 = vsub.f32 %v867, %v1222
    %v1224 = vmul.f32 %v1223, 100.0
    %v1225 = vmul.f32 %v1224, 1.442695
    %v1226 = vpow.pop %v1225
    %v1227 = vsub.f32 %v1221, %v1222
    %v1228 = vmul.f32 %v1227, 100.0
    %v1229 = vmul.f32 %v1228, 1.442695
    %v1230 = vpow.pop %v1229
    %v1231 = vadd.f32 %v1226, %v1230
    %v1232 = vlog2.pop %v1231
    %v1233 = vmul.f32 %v1232, 0.6931472
    %v1234 = vmul.f32 %v1233, 0.01
    %v1235 = vadd.f32 %v1222, %v1234
    %v1236 = vsel %vm79, %v1235, 0.0
    %1237 = vmax.xlane.f32.xlu0 %v1236
    %v1238 = vpop.xlane.xlu0 %1237
    %v1239 = vrot.slane %v1238, 4
    %v1240 = vmax.f32 %v1238, %v1239
    %v1241 = vrot.slane %v1240, 2
    %v1242 = vmax.f32 %v1240, %v1241
    %v1243 = vrot.slane %v1242, 1
    %v1244 = vmax.f32 %v1242, %v1243
    %s1245 = vtos %v1244
    %v1246 = vstv %s1245
    %vm1247 = vcmp.gt.f32.partialorder %v1246, 1.0
    %v1248 = vrcp.pop %v1246
    %v1249 = vsel %vm1247, %v1248, 1.0
    %v1250 = vmul.f32 %v1235, %v1249
    %1251 = vst [vmem:[#allocation8] sm:$0xff] %v1250
    // Predicated region
    $region42: #{tpu_custom_call.1} parent=1 // pred_check
      _
    $region43: #{tpu_custom_call.1} parent=1 // pred_check_branch
      %1253 = sbr.rel (0) target = $region45
    $region44: #{tpu_custom_call.1} parent=1 // pred_region
      %s1255 = ssub.s32 128, 128
      %1256 = vsyncadd [#allocation4], %s1255
      %s1258 = sshll.u32 [#allocation8], 4
      %s1259 = int_to_ptr.vmem [resolvable:$true] %s1258
      %1261 = dma.vmem_to_hbm [thread:$0]  %s1259, 128, %s7, [#allocation4]
    $region45: #{tpu_custom_call.1} parent=1 // pred_fallthru
      _
    // Predicated region
    $region46: #{tpu_custom_call.1} parent=1 // pred_check
      _
    $region47: #{tpu_custom_call.1} parent=1 // pred_check_branch
      %1263 = sbr.rel (0) target = $region49
    $region48: #{tpu_custom_call.1} parent=1 // pred_region
      %1264 = dma.done [#allocation4], 128
    $region49: #{tpu_custom_call.1} parent=1 // pred_fallthru
      _
    %1265 = vsyncpa [#allocation3], 1
    %1266 = vsyncpa [#allocation6], 1
    %1267 = vsyncpa [#allocation4], 1

</llo_original>
